<compile_context>
chip_gen: v7x
topology: tpu7x:2x2x1
jax: 0.10.0
libtpu: 0.0.40
codegen_flags: <defaults>
</compile_context>

<pallas_src>
import functools

import jax
import jax.numpy as jnp
import numpy as np
from jax.experimental import pallas as pl
from jax.experimental.pallas import tpu as pltpu

LANE = 128
SUBLANE = 8


# ---------------------------------------------------------------------------
# Fused kernel (one batch tile): all LSTM layers + fc + sigmoid.
# Ref order: x, (wih, whh, b) * num_layers, fc_w, fc_b, out
#   x_ref:   (T, Bt, Din0)   time-major batch tile
#   wih:     (Din_l, 4H)     transposed, gate order (i, f, o, g), g cols * 2
#   whh:     (H, 4H)         transposed, gate order (i, f, o, g), g cols * 2
#   b:       (1, 4H)         b_ih + b_hh, reordered, g entries * 2
#   fc_w:    (H, O_pad)      transposed, lane-padded
#   fc_b:    (1, O_pad)
#   out_ref: (Bt, O_pad)     lane-dense output slab
# ---------------------------------------------------------------------------
def make_cyclone_kernel(num_layers, T, Bt, H):
    n_in = 1 + 3 * num_layers + 2

    def kernel(*refs):
        x_ref = refs[0]
        out_ref = refs[n_in]

        seq = x_ref[...]                                 # (T, Bt, Din0)
        h = None
        for l in range(num_layers):
            wih = refs[1 + 3 * l][...]                   # (Din_l, 4H)
            whh = refs[2 + 3 * l][...]                   # (H, 4H)
            b = refs[3 + 3 * l][...]                     # (1, 4H)
            din = wih.shape[0]

            # Hoisted input projection for ALL timesteps: one MXU call.
            xp = jnp.dot(seq.reshape(T * Bt, din), wih,
                         preferred_element_type=jnp.float32) + b
            xp = xp.reshape(T, Bt, 4 * H)

            h = jnp.zeros((Bt, H), jnp.float32)
            c = jnp.zeros((Bt, H), jnp.float32)
            last = (l == num_layers - 1)
            hs = []
            for t in range(T):                           # static unroll (T small)
                gates = xp[t] + jnp.dot(h, whh,
                                        preferred_element_type=jnp.float32)
                # ONE full-vreg sigmoid; g recovered via tanh(x)=2*sigmoid(2x)-1
                # (g-gate pre-activations were pre-scaled by 2 in prepare_params).
                sig = jax.nn.sigmoid(gates)              # (Bt, 4H) = one vreg
                i_g = sig[:, :H]
                f_g = sig[:, H:2 * H]
                o_g = sig[:, 2 * H:3 * H]
                g_g = 2.0 * sig[:, 3 * H:] - 1.0         # single VPU fma
                c = f_g * c + i_g * g_g
                h = o_g * jnp.tanh(c)
                if not last:
                    hs.append(h)                         # stays in vregs
            if not last:
                seq = jnp.stack(hs, axis=0)              # (T, Bt, H), no VMEM trip

        fc_w = refs[1 + 3 * num_layers][...]             # (H, O_pad)
        fc_b = refs[2 + 3 * num_layers][...]             # (1, O_pad)
        out_ref[...] = jax.nn.sigmoid(
            jnp.dot(h, fc_w, preferred_element_type=jnp.float32) + fc_b)

    return kernel


# ---------------------------------------------------------------------------
# Parameter preparation (once): transpose, reorder gates from PyTorch's
# (i, f, g, o) to (i, f, o, g), scale g-gate by 2 (tanh-via-sigmoid identity),
# combine biases, pad fc to lanes.
# ---------------------------------------------------------------------------
def _reorder_scale_gates(w):
    i, f, g, o = jnp.split(w, 4, axis=0)
    return jnp.concatenate([i, f, o, 2.0 * g], axis=0)


def prepare_params(params, hidden_size, output_size):
    H = hidden_size
    layers = []
    for (w_ih, w_hh, b_ih, b_hh) in params["lstm"]:
        wih = jnp.transpose(_reorder_scale_gates(w_ih))          # (Din, 4H)
        whh = jnp.transpose(_reorder_scale_gates(w_hh))          # (H, 4H)
        b = _reorder_scale_gates(
            (b_ih + b_hh).reshape(4 * H, 1)).reshape(1, 4 * H)
        layers.append((wih, whh, b))
    O = output_size
    O_pad = max(LANE, ((O + LANE - 1) // LANE) * LANE)
    fc_w = jnp.zeros((H, O_pad), jnp.float32).at[:, :O].set(
        jnp.transpose(params["fc_w"]))
    fc_b = jnp.zeros((1, O_pad), jnp.float32).at[:, :O].set(
        params["fc_b"].reshape(1, O))
    return (layers, fc_w, fc_b)


# ---------------------------------------------------------------------------
# Forward: x (B, T, input_size) batch-first, like the PyTorch module.
# ---------------------------------------------------------------------------
@functools.partial(jax.jit, static_argnames=("output_size",))
def cyclone_predictor_forward(prepped, x, output_size):
    layers, fc_w, fc_b = prepped
    B, T, Din0 = x.shape
    H = layers[0][1].shape[0]
    num_layers = len(layers)
    O_pad = fc_w.shape[1]

    # Batch tiling: sublane-align, tile at most 128 rows per grid step.
    B_pad = max(SUBLANE, ((B + SUBLANE - 1) // SUBLANE) * SUBLANE)
    B_TILE = min(B_pad, 128)
    B_pad = ((B_pad + B_TILE - 1) // B_TILE) * B_TILE
    n_btiles = B_pad // B_TILE

    x_tm = jnp.transpose(x, (1, 0, 2))                   # time-major (T, B, Din)
    x_tm = jnp.pad(x_tm, ((0, 0), (0, B_pad - B), (0, 0)))

    flat = []
    for layer in layers:
        flat.extend(layer)

    # Weights/biases get constant index_maps -> stay VMEM-resident across the
    # (parallel) batch-tile grid; x / out blocks stream per tile.
    const2d = lambda b: (0, 0)
    in_specs = [pl.BlockSpec((T, B_TILE, Din0), lambda b: (0, b, 0))]
    in_specs += [pl.BlockSpec(w.shape, const2d) for w in flat]
    in_specs += [pl.BlockSpec(fc_w.shape, const2d),
                 pl.BlockSpec(fc_b.shape, const2d)]

    out_pad = pl.pallas_call(
        make_cyclone_kernel(num_layers, T, B_TILE, H),
        out_shape=jax.ShapeDtypeStruct((B_pad, O_pad), jnp.float32),
        grid=(n_btiles,),
        in_specs=in_specs,
        out_specs=pl.BlockSpec((B_TILE, O_pad), lambda b: (b, 0)),
        compiler_params=pltpu.CompilerParams(
            dimension_semantics=("parallel",)),
    )(x_tm, *flat, fc_w, fc_b)

    return out_pad[:B, :output_size]                     # drop padding


# ---------------------------------------------------------------------------
# Synthetic params (PyTorch layout / init) and pure-JAX reference.
# ---------------------------------------------------------------------------
def init_params(key, input_size, hidden_size, num_layers, output_size):
    k = 1.0 / np.sqrt(hidden_size)
    keys = jax.random.split(key, num_layers * 4 + 2)
    idx = 0
    params = {"lstm": []}
    in_size = input_size
    for _ in range(num_layers):
        w_ih = jax.random.uniform(keys[idx], (4 * hidden_size, in_size),
                                  jnp.float32, -k, k); idx += 1
        w_hh = jax.random.uniform(keys[idx], (4 * hidden_size, hidden_size),
                                  jnp.float32, -k, k); idx += 1
        b_ih = jax.random.uniform(keys[idx], (4 * hidden_size,),
                                  jnp.float32, -k, k); idx += 1
        b_hh = jax.random.uniform(keys[idx], (4 * hidden_size,),
                                  jnp.float32, -k, k); idx += 1
        params["lstm"].append((w_ih, w_hh, b_ih, b_hh))
        in_size = hidden_size
    params["fc_w"] = jax.random.uniform(keys[idx], (output_size, hidden_size),
                                        jnp.float32, -k, k); idx += 1
    params["fc_b"] = jax.random.uniform(keys[idx], (output_size,),
                                        jnp.float32, -k, k)
    return params


def reference_forward(params, x):
    """Same math as torch.nn.LSTM (gate order i,f,g,o) + Linear + sigmoid."""
    B, T, _ = x.shape
    h_seq = x
    for (w_ih, w_hh, b_ih, b_hh) in params["lstm"]:
        H = w_hh.shape[1]
        h = jnp.zeros((B, H), jnp.float32)
        c = jnp.zeros((B, H), jnp.float32)
        outs = []
        for t in range(T):
            gates = h_seq[:, t, :] @ w_ih.T + h @ w_hh.T + b_ih + b_hh
            i, f, g, o = jnp.split(gates, 4, axis=-1)
            i, f, o = jax.nn.sigmoid(i), jax.nn.sigmoid(f), jax.nn.sigmoid(o)
            g = jnp.tanh(g)
            c = f * c + i * g
            h = o * jnp.tanh(c)
            outs.append(h)
        h_seq = jnp.stack(outs, axis=1)
    out = h_seq[:, -1, :] @ params["fc_w"].T + params["fc_b"]
    return jax.nn.sigmoid(out)


if __name__ == "__main__":
    batch, seq = 2, 8
    input_size, hidden_size, num_layers, output_size = 4, 32, 2, 2

    root = jax.random.PRNGKey(0)
    pk, xk = jax.random.split(root)
    params = init_params(pk, input_size, hidden_size, num_layers, output_size)
    x = jax.random.normal(xk, (batch, seq, input_size), jnp.float32)

    prepped = prepare_params(params, hidden_size, output_size)
    out = cyclone_predictor_forward(prepped, x, output_size)
    out = jax.block_until_ready(out)

    ref = reference_forward(params, x)
    np.testing.assert_allclose(np.asarray(out), np.asarray(ref),
                               rtol=1e-5, atol=1e-5)
    assert out.shape == (batch, output_size)
    print("KERNEL_OK")
</pallas_src>

<mosaic_0001>
module attributes {stable_mosaic.version = 11 : i64} {
  func.func @kernel(%arg0: i32, %arg1: memref<8x8x4xf32, #tpu.memory_space<vmem>>, %arg2: memref<4x128xf32, #tpu.memory_space<vmem>>, %arg3: memref<32x128xf32, #tpu.memory_space<vmem>>, %arg4: memref<1x128xf32, #tpu.memory_space<vmem>>, %arg5: memref<32x128xf32, #tpu.memory_space<vmem>>, %arg6: memref<32x128xf32, #tpu.memory_space<vmem>>, %arg7: memref<1x128xf32, #tpu.memory_space<vmem>>, %arg8: memref<32x128xf32, #tpu.memory_space<vmem>>, %arg9: memref<1x128xf32, #tpu.memory_space<vmem>>, %arg10: memref<8x128xf32, #tpu.memory_space<vmem>>) attributes {dimension_semantics = [#tpu.dimension_semantics<parallel>], iteration_bounds = array<i64: 1>, scalar_prefetch = 0 : i64, scratch_operands = 0 : i64, tpu.core_type = #tpu.core_type<tc>, window_params = [{transform_indices = @transform_0, window_bounds = array<i64: 8, 8, 4>}, {pipeline_mode = #tpu.pipeline_mode<synchronous>, transform_indices = @transform_1, window_bounds = array<i64: 4, 128>}, {pipeline_mode = #tpu.pipeline_mode<synchronous>, transform_indices = @transform_2, window_bounds = array<i64: 32, 128>}, {pipeline_mode = #tpu.pipeline_mode<synchronous>, transform_indices = @transform_3, window_bounds = array<i64: 1, 128>}, {pipeline_mode = #tpu.pipeline_mode<synchronous>, transform_indices = @transform_4, window_bounds = array<i64: 32, 128>}, {pipeline_mode = #tpu.pipeline_mode<synchronous>, transform_indices = @transform_5, window_bounds = array<i64: 32, 128>}, {pipeline_mode = #tpu.pipeline_mode<synchronous>, transform_indices = @transform_6, window_bounds = array<i64: 1, 128>}, {pipeline_mode = #tpu.pipeline_mode<synchronous>, transform_indices = @transform_7, window_bounds = array<i64: 32, 128>}, {pipeline_mode = #tpu.pipeline_mode<synchronous>, transform_indices = @transform_8, window_bounds = array<i64: 1, 128>}, {transform_indices = @transform_9, window_bounds = array<i64: 8, 128>}]} {
    %c0 = arith.constant 0 : index
    %c0_0 = arith.constant 0 : index
    %c0_1 = arith.constant 0 : index
    %0 = vector.load %arg1[%c0, %c0_0, %c0_1] : memref<8x8x4xf32, #tpu.memory_space<vmem>>, vector<8x8x4xf32>
    %c0_2 = arith.constant 0 : index
    %c0_3 = arith.constant 0 : index
    %1 = vector.load %arg2[%c0_2, %c0_3] : memref<4x128xf32, #tpu.memory_space<vmem>>, vector<4x128xf32>
    %c0_4 = arith.constant 0 : index
    %c0_5 = arith.constant 0 : index
    %2 = vector.load %arg3[%c0_4, %c0_5] : memref<32x128xf32, #tpu.memory_space<vmem>>, vector<32x128xf32>
    %c0_6 = arith.constant 0 : index
    %c0_7 = arith.constant 0 : index
    %3 = vector.load %arg4[%c0_6, %c0_7] : memref<1x128xf32, #tpu.memory_space<vmem>>, vector<1x128xf32>
    %4 = vector.shape_cast %0 : vector<8x8x4xf32> to vector<64x4xf32>
    %cst = arith.constant dense<0.000000e+00> : vector<64x128xf32>
    %5 = tpu.matmul %4, %1, %cst {dimension_numbers = #tpu.dot_dimension_numbers<[1], [0], [0], [1], [0, 0, 1, 1], [], []>} : vector<64x4xf32>, vector<4x128xf32>, vector<64x128xf32> -> vector<64x128xf32>
    %6 = vector.broadcast %3 : vector<1x128xf32> to vector<64x128xf32>
    %7 = arith.addf %5, %6 : vector<64x128xf32>
    %8 = vector.shape_cast %7 : vector<64x128xf32> to vector<8x8x128xf32>
    %cst_8 = arith.constant 0.000000e+00 : f32
    %9 = vector.broadcast %cst_8 : f32 to vector<8x32xf32>
    %cst_9 = arith.constant 0.000000e+00 : f32
    %10 = vector.broadcast %cst_9 : f32 to vector<8x32xf32>
    %11 = vector.extract_strided_slice %8 {offsets = [0, 0, 0], sizes = [1, 8, 128], strides = [1, 1, 1]} : vector<8x8x128xf32> to vector<1x8x128xf32>
    %12 = vector.shape_cast %11 : vector<1x8x128xf32> to vector<8x128xf32>
    %cst_10 = arith.constant dense<0.000000e+00> : vector<8x128xf32>
    %13 = tpu.matmul %9, %2, %cst_10 {dimension_numbers = #tpu.dot_dimension_numbers<[1], [0], [0], [1], [0, 0, 1, 1], [], []>} : vector<8x32xf32>, vector<32x128xf32>, vector<8x128xf32> -> vector<8x128xf32>
    %14 = arith.addf %12, %13 : vector<8x128xf32>
    %15 = arith.negf %14 : vector<8x128xf32>
    %16 = math.exp %15 : vector<8x128xf32>
    %cst_11 = arith.constant 1.000000e+00 : f32
    %17 = vector.broadcast %cst_11 : f32 to vector<8x128xf32>
    %18 = arith.addf %17, %16 : vector<8x128xf32>
    %19 = arith.divf %17, %18 : vector<8x128xf32>
    %20 = vector.extract_strided_slice %19 {offsets = [0, 0], sizes = [8, 32], strides = [1, 1]} : vector<8x128xf32> to vector<8x32xf32>
    %21 = vector.extract_strided_slice %19 {offsets = [0, 32], sizes = [8, 32], strides = [1, 1]} : vector<8x128xf32> to vector<8x32xf32>
    %22 = vector.extract_strided_slice %19 {offsets = [0, 64], sizes = [8, 32], strides = [1, 1]} : vector<8x128xf32> to vector<8x32xf32>
    %23 = vector.extract_strided_slice %19 {offsets = [0, 96], sizes = [8, 32], strides = [1, 1]} : vector<8x128xf32> to vector<8x32xf32>
    %cst_12 = arith.constant 2.000000e+00 : f32
    %24 = vector.broadcast %cst_12 : f32 to vector<8x32xf32>
    %25 = arith.mulf %24, %23 : vector<8x32xf32>
    %cst_13 = arith.constant 1.000000e+00 : f32
    %26 = vector.broadcast %cst_13 : f32 to vector<8x32xf32>
    %27 = arith.subf %25, %26 : vector<8x32xf32>
    %28 = arith.mulf %21, %10 : vector<8x32xf32>
    %29 = arith.mulf %20, %27 : vector<8x32xf32>
    %30 = arith.addf %28, %29 : vector<8x32xf32>
    %31 = math.tanh %30 : vector<8x32xf32>
    %32 = arith.mulf %22, %31 : vector<8x32xf32>
    %33 = vector.extract_strided_slice %8 {offsets = [1, 0, 0], sizes = [1, 8, 128], strides = [1, 1, 1]} : vector<8x8x128xf32> to vector<1x8x128xf32>
    %34 = vector.shape_cast %33 : vector<1x8x128xf32> to vector<8x128xf32>
    %cst_14 = arith.constant dense<0.000000e+00> : vector<8x128xf32>
    %35 = tpu.matmul %32, %2, %cst_14 {dimension_numbers = #tpu.dot_dimension_numbers<[1], [0], [0], [1], [0, 0, 1, 1], [], []>} : vector<8x32xf32>, vector<32x128xf32>, vector<8x128xf32> -> vector<8x128xf32>
    %36 = arith.addf %34, %35 : vector<8x128xf32>
    %37 = arith.negf %36 : vector<8x128xf32>
    %38 = math.exp %37 : vector<8x128xf32>
    %cst_15 = arith.constant 1.000000e+00 : f32
    %39 = vector.broadcast %cst_15 : f32 to vector<8x128xf32>
    %40 = arith.addf %39, %38 : vector<8x128xf32>
    %41 = arith.divf %39, %40 : vector<8x128xf32>
    %42 = vector.extract_strided_slice %41 {offsets = [0, 0], sizes = [8, 32], strides = [1, 1]} : vector<8x128xf32> to vector<8x32xf32>
    %43 = vector.extract_strided_slice %41 {offsets = [0, 32], sizes = [8, 32], strides = [1, 1]} : vector<8x128xf32> to vector<8x32xf32>
    %44 = vector.extract_strided_slice %41 {offsets = [0, 64], sizes = [8, 32], strides = [1, 1]} : vector<8x128xf32> to vector<8x32xf32>
    %45 = vector.extract_strided_slice %41 {offsets = [0, 96], sizes = [8, 32], strides = [1, 1]} : vector<8x128xf32> to vector<8x32xf32>
    %cst_16 = arith.constant 2.000000e+00 : f32
    %46 = vector.broadcast %cst_16 : f32 to vector<8x32xf32>
    %47 = arith.mulf %46, %45 : vector<8x32xf32>
    %cst_17 = arith.constant 1.000000e+00 : f32
    %48 = vector.broadcast %cst_17 : f32 to vector<8x32xf32>
    %49 = arith.subf %47, %48 : vector<8x32xf32>
    %50 = arith.mulf %43, %30 : vector<8x32xf32>
    %51 = arith.mulf %42, %49 : vector<8x32xf32>
    %52 = arith.addf %50, %51 : vector<8x32xf32>
    %53 = math.tanh %52 : vector<8x32xf32>
    %54 = arith.mulf %44, %53 : vector<8x32xf32>
    %55 = vector.extract_strided_slice %8 {offsets = [2, 0, 0], sizes = [1, 8, 128], strides = [1, 1, 1]} : vector<8x8x128xf32> to vector<1x8x128xf32>
    %56 = vector.shape_cast %55 : vector<1x8x128xf32> to vector<8x128xf32>
    %cst_18 = arith.constant dense<0.000000e+00> : vector<8x128xf32>
    %57 = tpu.matmul %54, %2, %cst_18 {dimension_numbers = #tpu.dot_dimension_numbers<[1], [0], [0], [1], [0, 0, 1, 1], [], []>} : vector<8x32xf32>, vector<32x128xf32>, vector<8x128xf32> -> vector<8x128xf32>
    %58 = arith.addf %56, %57 : vector<8x128xf32>
    %59 = arith.negf %58 : vector<8x128xf32>
    %60 = math.exp %59 : vector<8x128xf32>
    %cst_19 = arith.constant 1.000000e+00 : f32
    %61 = vector.broadcast %cst_19 : f32 to vector<8x128xf32>
    %62 = arith.addf %61, %60 : vector<8x128xf32>
    %63 = arith.divf %61, %62 : vector<8x128xf32>
    %64 = vector.extract_strided_slice %63 {offsets = [0, 0], sizes = [8, 32], strides = [1, 1]} : vector<8x128xf32> to vector<8x32xf32>
    %65 = vector.extract_strided_slice %63 {offsets = [0, 32], sizes = [8, 32], strides = [1, 1]} : vector<8x128xf32> to vector<8x32xf32>
    %66 = vector.extract_strided_slice %63 {offsets = [0, 64], sizes = [8, 32], strides = [1, 1]} : vector<8x128xf32> to vector<8x32xf32>
    %67 = vector.extract_strided_slice %63 {offsets = [0, 96], sizes = [8, 32], strides = [1, 1]} : vector<8x128xf32> to vector<8x32xf32>
    %cst_20 = arith.constant 2.000000e+00 : f32
    %68 = vector.broadcast %cst_20 : f32 to vector<8x32xf32>
    %69 = arith.mulf %68, %67 : vector<8x32xf32>
    %cst_21 = arith.constant 1.000000e+00 : f32
    %70 = vector.broadcast %cst_21 : f32 to vector<8x32xf32>
    %71 = arith.subf %69, %70 : vector<8x32xf32>
    %72 = arith.mulf %65, %52 : vector<8x32xf32>
    %73 = arith.mulf %64, %71 : vector<8x32xf32>
    %74 = arith.addf %72, %73 : vector<8x32xf32>
    %75 = math.tanh %74 : vector<8x32xf32>
    %76 = arith.mulf %66, %75 : vector<8x32xf32>
    %77 = vector.extract_strided_slice %8 {offsets = [3, 0, 0], sizes = [1, 8, 128], strides = [1, 1, 1]} : vector<8x8x128xf32> to vector<1x8x128xf32>
    %78 = vector.shape_cast %77 : vector<1x8x128xf32> to vector<8x128xf32>
    %cst_22 = arith.constant dense<0.000000e+00> : vector<8x128xf32>
    %79 = tpu.matmul %76, %2, %cst_22 {dimension_numbers = #tpu.dot_dimension_numbers<[1], [0], [0], [1], [0, 0, 1, 1], [], []>} : vector<8x32xf32>, vector<32x128xf32>, vector<8x128xf32> -> vector<8x128xf32>
    %80 = arith.addf %78, %79 : vector<8x128xf32>
    %81 = arith.negf %80 : vector<8x128xf32>
    %82 = math.exp %81 : vector<8x128xf32>
    %cst_23 = arith.constant 1.000000e+00 : f32
    %83 = vector.broadcast %cst_23 : f32 to vector<8x128xf32>
    %84 = arith.addf %83, %82 : vector<8x128xf32>
    %85 = arith.divf %83, %84 : vector<8x128xf32>
    %86 = vector.extract_strided_slice %85 {offsets = [0, 0], sizes = [8, 32], strides = [1, 1]} : vector<8x128xf32> to vector<8x32xf32>
    %87 = vector.extract_strided_slice %85 {offsets = [0, 32], sizes = [8, 32], strides = [1, 1]} : vector<8x128xf32> to vector<8x32xf32>
    %88 = vector.extract_strided_slice %85 {offsets = [0, 64], sizes = [8, 32], strides = [1, 1]} : vector<8x128xf32> to vector<8x32xf32>
    %89 = vector.extract_strided_slice %85 {offsets = [0, 96], sizes = [8, 32], strides = [1, 1]} : vector<8x128xf32> to vector<8x32xf32>
    %cst_24 = arith.constant 2.000000e+00 : f32
    %90 = vector.broadcast %cst_24 : f32 to vector<8x32xf32>
    %91 = arith.mulf %90, %89 : vector<8x32xf32>
    %cst_25 = arith.constant 1.000000e+00 : f32
    %92 = vector.broadcast %cst_25 : f32 to vector<8x32xf32>
    %93 = arith.subf %91, %92 : vector<8x32xf32>
    %94 = arith.mulf %87, %74 : vector<8x32xf32>
    %95 = arith.mulf %86, %93 : vector<8x32xf32>
    %96 = arith.addf %94, %95 : vector<8x32xf32>
    %97 = math.tanh %96 : vector<8x32xf32>
    %98 = arith.mulf %88, %97 : vector<8x32xf32>
    %99 = vector.extract_strided_slice %8 {offsets = [4, 0, 0], sizes = [1, 8, 128], strides = [1, 1, 1]} : vector<8x8x128xf32> to vector<1x8x128xf32>
    %100 = vector.shape_cast %99 : vector<1x8x128xf32> to vector<8x128xf32>
    %cst_26 = arith.constant dense<0.000000e+00> : vector<8x128xf32>
    %101 = tpu.matmul %98, %2, %cst_26 {dimension_numbers = #tpu.dot_dimension_numbers<[1], [0], [0], [1], [0, 0, 1, 1], [], []>} : vector<8x32xf32>, vector<32x128xf32>, vector<8x128xf32> -> vector<8x128xf32>
    %102 = arith.addf %100, %101 : vector<8x128xf32>
    %103 = arith.negf %102 : vector<8x128xf32>
    %104 = math.exp %103 : vector<8x128xf32>
    %cst_27 = arith.constant 1.000000e+00 : f32
    %105 = vector.broadcast %cst_27 : f32 to vector<8x128xf32>
    %106 = arith.addf %105, %104 : vector<8x128xf32>
    %107 = arith.divf %105, %106 : vector<8x128xf32>
    %108 = vector.extract_strided_slice %107 {offsets = [0, 0], sizes = [8, 32], strides = [1, 1]} : vector<8x128xf32> to vector<8x32xf32>
    %109 = vector.extract_strided_slice %107 {offsets = [0, 32], sizes = [8, 32], strides = [1, 1]} : vector<8x128xf32> to vector<8x32xf32>
    %110 = vector.extract_strided_slice %107 {offsets = [0, 64], sizes = [8, 32], strides = [1, 1]} : vector<8x128xf32> to vector<8x32xf32>
    %111 = vector.extract_strided_slice %107 {offsets = [0, 96], sizes = [8, 32], strides = [1, 1]} : vector<8x128xf32> to vector<8x32xf32>
    %cst_28 = arith.constant 2.000000e+00 : f32
    %112 = vector.broadcast %cst_28 : f32 to vector<8x32xf32>
    %113 = arith.mulf %112, %111 : vector<8x32xf32>
    %cst_29 = arith.constant 1.000000e+00 : f32
    %114 = vector.broadcast %cst_29 : f32 to vector<8x32xf32>
    %115 = arith.subf %113, %114 : vector<8x32xf32>
    %116 = arith.mulf %109, %96 : vector<8x32xf32>
    %117 = arith.mulf %108, %115 : vector<8x32xf32>
    %118 = arith.addf %116, %117 : vector<8x32xf32>
    %119 = math.tanh %118 : vector<8x32xf32>
    %120 = arith.mulf %110, %119 : vector<8x32xf32>
    %121 = vector.extract_strided_slice %8 {offsets = [5, 0, 0], sizes = [1, 8, 128], strides = [1, 1, 1]} : vector<8x8x128xf32> to vector<1x8x128xf32>
    %122 = vector.shape_cast %121 : vector<1x8x128xf32> to vector<8x128xf32>
    %cst_30 = arith.constant dense<0.000000e+00> : vector<8x128xf32>
    %123 = tpu.matmul %120, %2, %cst_30 {dimension_numbers = #tpu.dot_dimension_numbers<[1], [0], [0], [1], [0, 0, 1, 1], [], []>} : vector<8x32xf32>, vector<32x128xf32>, vector<8x128xf32> -> vector<8x128xf32>
    %124 = arith.addf %122, %123 : vector<8x128xf32>
    %125 = arith.negf %124 : vector<8x128xf32>
    %126 = math.exp %125 : vector<8x128xf32>
    %cst_31 = arith.constant 1.000000e+00 : f32
    %127 = vector.broadcast %cst_31 : f32 to vector<8x128xf32>
    %128 = arith.addf %127, %126 : vector<8x128xf32>
    %129 = arith.divf %127, %128 : vector<8x128xf32>
    %130 = vector.extract_strided_slice %129 {offsets = [0, 0], sizes = [8, 32], strides = [1, 1]} : vector<8x128xf32> to vector<8x32xf32>
    %131 = vector.extract_strided_slice %129 {offsets = [0, 32], sizes = [8, 32], strides = [1, 1]} : vector<8x128xf32> to vector<8x32xf32>
    %132 = vector.extract_strided_slice %129 {offsets = [0, 64], sizes = [8, 32], strides = [1, 1]} : vector<8x128xf32> to vector<8x32xf32>
    %133 = vector.extract_strided_slice %129 {offsets = [0, 96], sizes = [8, 32], strides = [1, 1]} : vector<8x128xf32> to vector<8x32xf32>
    %cst_32 = arith.constant 2.000000e+00 : f32
    %134 = vector.broadcast %cst_32 : f32 to vector<8x32xf32>
    %135 = arith.mulf %134, %133 : vector<8x32xf32>
    %cst_33 = arith.constant 1.000000e+00 : f32
    %136 = vector.broadcast %cst_33 : f32 to vector<8x32xf32>
    %137 = arith.subf %135, %136 : vector<8x32xf32>
    %138 = arith.mulf %131, %118 : vector<8x32xf32>
    %139 = arith.mulf %130, %137 : vector<8x32xf32>
    %140 = arith.addf %138, %139 : vector<8x32xf32>
    %141 = math.tanh %140 : vector<8x32xf32>
    %142 = arith.mulf %132, %141 : vector<8x32xf32>
    %143 = vector.extract_strided_slice %8 {offsets = [6, 0, 0], sizes = [1, 8, 128], strides = [1, 1, 1]} : vector<8x8x128xf32> to vector<1x8x128xf32>
    %144 = vector.shape_cast %143 : vector<1x8x128xf32> to vector<8x128xf32>
    %cst_34 = arith.constant dense<0.000000e+00> : vector<8x128xf32>
    %145 = tpu.matmul %142, %2, %cst_34 {dimension_numbers = #tpu.dot_dimension_numbers<[1], [0], [0], [1], [0, 0, 1, 1], [], []>} : vector<8x32xf32>, vector<32x128xf32>, vector<8x128xf32> -> vector<8x128xf32>
    %146 = arith.addf %144, %145 : vector<8x128xf32>
    %147 = arith.negf %146 : vector<8x128xf32>
    %148 = math.exp %147 : vector<8x128xf32>
    %cst_35 = arith.constant 1.000000e+00 : f32
    %149 = vector.broadcast %cst_35 : f32 to vector<8x128xf32>
    %150 = arith.addf %149, %148 : vector<8x128xf32>
    %151 = arith.divf %149, %150 : vector<8x128xf32>
    %152 = vector.extract_strided_slice %151 {offsets = [0, 0], sizes = [8, 32], strides = [1, 1]} : vector<8x128xf32> to vector<8x32xf32>
    %153 = vector.extract_strided_slice %151 {offsets = [0, 32], sizes = [8, 32], strides = [1, 1]} : vector<8x128xf32> to vector<8x32xf32>
    %154 = vector.extract_strided_slice %151 {offsets = [0, 64], sizes = [8, 32], strides = [1, 1]} : vector<8x128xf32> to vector<8x32xf32>
    %155 = vector.extract_strided_slice %151 {offsets = [0, 96], sizes = [8, 32], strides = [1, 1]} : vector<8x128xf32> to vector<8x32xf32>
    %cst_36 = arith.constant 2.000000e+00 : f32
    %156 = vector.broadcast %cst_36 : f32 to vector<8x32xf32>
    %157 = arith.mulf %156, %155 : vector<8x32xf32>
    %cst_37 = arith.constant 1.000000e+00 : f32
    %158 = vector.broadcast %cst_37 : f32 to vector<8x32xf32>
    %159 = arith.subf %157, %158 : vector<8x32xf32>
    %160 = arith.mulf %153, %140 : vector<8x32xf32>
    %161 = arith.mulf %152, %159 : vector<8x32xf32>
    %162 = arith.addf %160, %161 : vector<8x32xf32>
    %163 = math.tanh %162 : vector<8x32xf32>
    %164 = arith.mulf %154, %163 : vector<8x32xf32>
    %165 = vector.extract_strided_slice %8 {offsets = [7, 0, 0], sizes = [1, 8, 128], strides = [1, 1, 1]} : vector<8x8x128xf32> to vector<1x8x128xf32>
    %166 = vector.shape_cast %165 : vector<1x8x128xf32> to vector<8x128xf32>
    %cst_38 = arith.constant dense<0.000000e+00> : vector<8x128xf32>
    %167 = tpu.matmul %164, %2, %cst_38 {dimension_numbers = #tpu.dot_dimension_numbers<[1], [0], [0], [1], [0, 0, 1, 1], [], []>} : vector<8x32xf32>, vector<32x128xf32>, vector<8x128xf32> -> vector<8x128xf32>
    %168 = arith.addf %166, %167 : vector<8x128xf32>
    %169 = arith.negf %168 : vector<8x128xf32>
    %170 = math.exp %169 : vector<8x128xf32>
    %cst_39 = arith.constant 1.000000e+00 : f32
    %171 = vector.broadcast %cst_39 : f32 to vector<8x128xf32>
    %172 = arith.addf %171, %170 : vector<8x128xf32>
    %173 = arith.divf %171, %172 : vector<8x128xf32>
    %174 = vector.extract_strided_slice %173 {offsets = [0, 0], sizes = [8, 32], strides = [1, 1]} : vector<8x128xf32> to vector<8x32xf32>
    %175 = vector.extract_strided_slice %173 {offsets = [0, 32], sizes = [8, 32], strides = [1, 1]} : vector<8x128xf32> to vector<8x32xf32>
    %176 = vector.extract_strided_slice %173 {offsets = [0, 64], sizes = [8, 32], strides = [1, 1]} : vector<8x128xf32> to vector<8x32xf32>
    %177 = vector.extract_strided_slice %173 {offsets = [0, 96], sizes = [8, 32], strides = [1, 1]} : vector<8x128xf32> to vector<8x32xf32>
    %cst_40 = arith.constant 2.000000e+00 : f32
    %178 = vector.broadcast %cst_40 : f32 to vector<8x32xf32>
    %179 = arith.mulf %178, %177 : vector<8x32xf32>
    %cst_41 = arith.constant 1.000000e+00 : f32
    %180 = vector.broadcast %cst_41 : f32 to vector<8x32xf32>
    %181 = arith.subf %179, %180 : vector<8x32xf32>
    %182 = arith.mulf %175, %162 : vector<8x32xf32>
    %183 = arith.mulf %174, %181 : vector<8x32xf32>
    %184 = arith.addf %182, %183 : vector<8x32xf32>
    %185 = math.tanh %184 : vector<8x32xf32>
    %186 = arith.mulf %176, %185 : vector<8x32xf32>
    %187 = vector.shape_cast %32 : vector<8x32xf32> to vector<1x8x32xf32>
    %188 = vector.shape_cast %54 : vector<8x32xf32> to vector<1x8x32xf32>
    %189 = vector.shape_cast %76 : vector<8x32xf32> to vector<1x8x32xf32>
    %190 = vector.shape_cast %98 : vector<8x32xf32> to vector<1x8x32xf32>
    %191 = vector.shape_cast %120 : vector<8x32xf32> to vector<1x8x32xf32>
    %192 = vector.shape_cast %142 : vector<8x32xf32> to vector<1x8x32xf32>
    %193 = vector.shape_cast %164 : vector<8x32xf32> to vector<1x8x32xf32>
    %194 = vector.shape_cast %186 : vector<8x32xf32> to vector<1x8x32xf32>
    %195 = tpu.concatenate %187, %188, %189, %190, %191, %192, %193, %194 in 0 : vector<1x8x32xf32>, vector<1x8x32xf32>, vector<1x8x32xf32>, vector<1x8x32xf32>, vector<1x8x32xf32>, vector<1x8x32xf32>, vector<1x8x32xf32>, vector<1x8x32xf32> -> vector<8x8x32xf32>
    %c0_42 = arith.constant 0 : index
    %c0_43 = arith.constant 0 : index
    %196 = vector.load %arg5[%c0_42, %c0_43] : memref<32x128xf32, #tpu.memory_space<vmem>>, vector<32x128xf32>
    %c0_44 = arith.constant 0 : index
    %c0_45 = arith.constant 0 : index
    %197 = vector.load %arg6[%c0_44, %c0_45] : memref<32x128xf32, #tpu.memory_space<vmem>>, vector<32x128xf32>
    %c0_46 = arith.constant 0 : index
    %c0_47 = arith.constant 0 : index
    %198 = vector.load %arg7[%c0_46, %c0_47] : memref<1x128xf32, #tpu.memory_space<vmem>>, vector<1x128xf32>
    %199 = vector.shape_cast %195 : vector<8x8x32xf32> to vector<64x32xf32>
    %cst_48 = arith.constant dense<0.000000e+00> : vector<64x128xf32>
    %200 = tpu.matmul %199, %196, %cst_48 {dimension_numbers = #tpu.dot_dimension_numbers<[1], [0], [0], [1], [0, 0, 1, 1], [], []>} : vector<64x32xf32>, vector<32x128xf32>, vector<64x128xf32> -> vector<64x128xf32>
    %201 = vector.broadcast %198 : vector<1x128xf32> to vector<64x128xf32>
    %202 = arith.addf %200, %201 : vector<64x128xf32>
    %203 = vector.shape_cast %202 : vector<64x128xf32> to vector<8x8x128xf32>
    %cst_49 = arith.constant 0.000000e+00 : f32
    %204 = vector.broadcast %cst_49 : f32 to vector<8x32xf32>
    %cst_50 = arith.constant 0.000000e+00 : f32
    %205 = vector.broadcast %cst_50 : f32 to vector<8x32xf32>
    %206 = vector.extract_strided_slice %203 {offsets = [0, 0, 0], sizes = [1, 8, 128], strides = [1, 1, 1]} : vector<8x8x128xf32> to vector<1x8x128xf32>
    %207 = vector.shape_cast %206 : vector<1x8x128xf32> to vector<8x128xf32>
    %cst_51 = arith.constant dense<0.000000e+00> : vector<8x128xf32>
    %208 = tpu.matmul %204, %197, %cst_51 {dimension_numbers = #tpu.dot_dimension_numbers<[1], [0], [0], [1], [0, 0, 1, 1], [], []>} : vector<8x32xf32>, vector<32x128xf32>, vector<8x128xf32> -> vector<8x128xf32>
    %209 = arith.addf %207, %208 : vector<8x128xf32>
    %210 = arith.negf %209 : vector<8x128xf32>
    %211 = math.exp %210 : vector<8x128xf32>
    %cst_52 = arith.constant 1.000000e+00 : f32
    %212 = vector.broadcast %cst_52 : f32 to vector<8x128xf32>
    %213 = arith.addf %212, %211 : vector<8x128xf32>
    %214 = arith.divf %212, %213 : vector<8x128xf32>
    %215 = vector.extract_strided_slice %214 {offsets = [0, 0], sizes = [8, 32], strides = [1, 1]} : vector<8x128xf32> to vector<8x32xf32>
    %216 = vector.extract_strided_slice %214 {offsets = [0, 32], sizes = [8, 32], strides = [1, 1]} : vector<8x128xf32> to vector<8x32xf32>
    %217 = vector.extract_strided_slice %214 {offsets = [0, 64], sizes = [8, 32], strides = [1, 1]} : vector<8x128xf32> to vector<8x32xf32>
    %218 = vector.extract_strided_slice %214 {offsets = [0, 96], sizes = [8, 32], strides = [1, 1]} : vector<8x128xf32> to vector<8x32xf32>
    %cst_53 = arith.constant 2.000000e+00 : f32
    %219 = vector.broadcast %cst_53 : f32 to vector<8x32xf32>
    %220 = arith.mulf %219, %218 : vector<8x32xf32>
    %cst_54 = arith.constant 1.000000e+00 : f32
    %221 = vector.broadcast %cst_54 : f32 to vector<8x32xf32>
    %222 = arith.subf %220, %221 : vector<8x32xf32>
    %223 = arith.mulf %216, %205 : vector<8x32xf32>
    %224 = arith.mulf %215, %222 : vector<8x32xf32>
    %225 = arith.addf %223, %224 : vector<8x32xf32>
    %226 = math.tanh %225 : vector<8x32xf32>
    %227 = arith.mulf %217, %226 : vector<8x32xf32>
    %228 = vector.extract_strided_slice %203 {offsets = [1, 0, 0], sizes = [1, 8, 128], strides = [1, 1, 1]} : vector<8x8x128xf32> to vector<1x8x128xf32>
    %229 = vector.shape_cast %228 : vector<1x8x128xf32> to vector<8x128xf32>
    %cst_55 = arith.constant dense<0.000000e+00> : vector<8x128xf32>
    %230 = tpu.matmul %227, %197, %cst_55 {dimension_numbers = #tpu.dot_dimension_numbers<[1], [0], [0], [1], [0, 0, 1, 1], [], []>} : vector<8x32xf32>, vector<32x128xf32>, vector<8x128xf32> -> vector<8x128xf32>
    %231 = arith.addf %229, %230 : vector<8x128xf32>
    %232 = arith.negf %231 : vector<8x128xf32>
    %233 = math.exp %232 : vector<8x128xf32>
    %cst_56 = arith.constant 1.000000e+00 : f32
    %234 = vector.broadcast %cst_56 : f32 to vector<8x128xf32>
    %235 = arith.addf %234, %233 : vector<8x128xf32>
    %236 = arith.divf %234, %235 : vector<8x128xf32>
    %237 = vector.extract_strided_slice %236 {offsets = [0, 0], sizes = [8, 32], strides = [1, 1]} : vector<8x128xf32> to vector<8x32xf32>
    %238 = vector.extract_strided_slice %236 {offsets = [0, 32], sizes = [8, 32], strides = [1, 1]} : vector<8x128xf32> to vector<8x32xf32>
    %239 = vector.extract_strided_slice %236 {offsets = [0, 64], sizes = [8, 32], strides = [1, 1]} : vector<8x128xf32> to vector<8x32xf32>
    %240 = vector.extract_strided_slice %236 {offsets = [0, 96], sizes = [8, 32], strides = [1, 1]} : vector<8x128xf32> to vector<8x32xf32>
    %cst_57 = arith.constant 2.000000e+00 : f32
    %241 = vector.broadcast %cst_57 : f32 to vector<8x32xf32>
    %242 = arith.mulf %241, %240 : vector<8x32xf32>
    %cst_58 = arith.constant 1.000000e+00 : f32
    %243 = vector.broadcast %cst_58 : f32 to vector<8x32xf32>
    %244 = arith.subf %242, %243 : vector<8x32xf32>
    %245 = arith.mulf %238, %225 : vector<8x32xf32>
    %246 = arith.mulf %237, %244 : vector<8x32xf32>
    %247 = arith.addf %245, %246 : vector<8x32xf32>
    %248 = math.tanh %247 : vector<8x32xf32>
    %249 = arith.mulf %239, %248 : vector<8x32xf32>
    %250 = vector.extract_strided_slice %203 {offsets = [2, 0, 0], sizes = [1, 8, 128], strides = [1, 1, 1]} : vector<8x8x128xf32> to vector<1x8x128xf32>
    %251 = vector.shape_cast %250 : vector<1x8x128xf32> to vector<8x128xf32>
    %cst_59 = arith.constant dense<0.000000e+00> : vector<8x128xf32>
    %252 = tpu.matmul %249, %197, %cst_59 {dimension_numbers = #tpu.dot_dimension_numbers<[1], [0], [0], [1], [0, 0, 1, 1], [], []>} : vector<8x32xf32>, vector<32x128xf32>, vector<8x128xf32> -> vector<8x128xf32>
    %253 = arith.addf %251, %252 : vector<8x128xf32>
    %254 = arith.negf %253 : vector<8x128xf32>
    %255 = math.exp %254 : vector<8x128xf32>
    %cst_60 = arith.constant 1.000000e+00 : f32
    %256 = vector.broadcast %cst_60 : f32 to vector<8x128xf32>
    %257 = arith.addf %256, %255 : vector<8x128xf32>
    %258 = arith.divf %256, %257 : vector<8x128xf32>
    %259 = vector.extract_strided_slice %258 {offsets = [0, 0], sizes = [8, 32], strides = [1, 1]} : vector<8x128xf32> to vector<8x32xf32>
    %260 = vector.extract_strided_slice %258 {offsets = [0, 32], sizes = [8, 32], strides = [1, 1]} : vector<8x128xf32> to vector<8x32xf32>
    %261 = vector.extract_strided_slice %258 {offsets = [0, 64], sizes = [8, 32], strides = [1, 1]} : vector<8x128xf32> to vector<8x32xf32>
    %262 = vector.extract_strided_slice %258 {offsets = [0, 96], sizes = [8, 32], strides = [1, 1]} : vector<8x128xf32> to vector<8x32xf32>
    %cst_61 = arith.constant 2.000000e+00 : f32
    %263 = vector.broadcast %cst_61 : f32 to vector<8x32xf32>
    %264 = arith.mulf %263, %262 : vector<8x32xf32>
    %cst_62 = arith.constant 1.000000e+00 : f32
    %265 = vector.broadcast %cst_62 : f32 to vector<8x32xf32>
    %266 = arith.subf %264, %265 : vector<8x32xf32>
    %267 = arith.mulf %260, %247 : vector<8x32xf32>
    %268 = arith.mulf %259, %266 : vector<8x32xf32>
    %269 = arith.addf %267, %268 : vector<8x32xf32>
    %270 = math.tanh %269 : vector<8x32xf32>
    %271 = arith.mulf %261, %270 : vector<8x32xf32>
    %272 = vector.extract_strided_slice %203 {offsets = [3, 0, 0], sizes = [1, 8, 128], strides = [1, 1, 1]} : vector<8x8x128xf32> to vector<1x8x128xf32>
    %273 = vector.shape_cast %272 : vector<1x8x128xf32> to vector<8x128xf32>
    %cst_63 = arith.constant dense<0.000000e+00> : vector<8x128xf32>
    %274 = tpu.matmul %271, %197, %cst_63 {dimension_numbers = #tpu.dot_dimension_numbers<[1], [0], [0], [1], [0, 0, 1, 1], [], []>} : vector<8x32xf32>, vector<32x128xf32>, vector<8x128xf32> -> vector<8x128xf32>
    %275 = arith.addf %273, %274 : vector<8x128xf32>
    %276 = arith.negf %275 : vector<8x128xf32>
    %277 = math.exp %276 : vector<8x128xf32>
    %cst_64 = arith.constant 1.000000e+00 : f32
    %278 = vector.broadcast %cst_64 : f32 to vector<8x128xf32>
    %279 = arith.addf %278, %277 : vector<8x128xf32>
    %280 = arith.divf %278, %279 : vector<8x128xf32>
    %281 = vector.extract_strided_slice %280 {offsets = [0, 0], sizes = [8, 32], strides = [1, 1]} : vector<8x128xf32> to vector<8x32xf32>
    %282 = vector.extract_strided_slice %280 {offsets = [0, 32], sizes = [8, 32], strides = [1, 1]} : vector<8x128xf32> to vector<8x32xf32>
    %283 = vector.extract_strided_slice %280 {offsets = [0, 64], sizes = [8, 32], strides = [1, 1]} : vector<8x128xf32> to vector<8x32xf32>
    %284 = vector.extract_strided_slice %280 {offsets = [0, 96], sizes = [8, 32], strides = [1, 1]} : vector<8x128xf32> to vector<8x32xf32>
    %cst_65 = arith.constant 2.000000e+00 : f32
    %285 = vector.broadcast %cst_65 : f32 to vector<8x32xf32>
    %286 = arith.mulf %285, %284 : vector<8x32xf32>
    %cst_66 = arith.constant 1.000000e+00 : f32
    %287 = vector.broadcast %cst_66 : f32 to vector<8x32xf32>
    %288 = arith.subf %286, %287 : vector<8x32xf32>
    %289 = arith.mulf %282, %269 : vector<8x32xf32>
    %290 = arith.mulf %281, %288 : vector<8x32xf32>
    %291 = arith.addf %289, %290 : vector<8x32xf32>
    %292 = math.tanh %291 : vector<8x32xf32>
    %293 = arith.mulf %283, %292 : vector<8x32xf32>
    %294 = vector.extract_strided_slice %203 {offsets = [4, 0, 0], sizes = [1, 8, 128], strides = [1, 1, 1]} : vector<8x8x128xf32> to vector<1x8x128xf32>
    %295 = vector.shape_cast %294 : vector<1x8x128xf32> to vector<8x128xf32>
    %cst_67 = arith.constant dense<0.000000e+00> : vector<8x128xf32>
    %296 = tpu.matmul %293, %197, %cst_67 {dimension_numbers = #tpu.dot_dimension_numbers<[1], [0], [0], [1], [0, 0, 1, 1], [], []>} : vector<8x32xf32>, vector<32x128xf32>, vector<8x128xf32> -> vector<8x128xf32>
    %297 = arith.addf %295, %296 : vector<8x128xf32>
    %298 = arith.negf %297 : vector<8x128xf32>
    %299 = math.exp %298 : vector<8x128xf32>
    %cst_68 = arith.constant 1.000000e+00 : f32
    %300 = vector.broadcast %cst_68 : f32 to vector<8x128xf32>
    %301 = arith.addf %300, %299 : vector<8x128xf32>
    %302 = arith.divf %300, %301 : vector<8x128xf32>
    %303 = vector.extract_strided_slice %302 {offsets = [0, 0], sizes = [8, 32], strides = [1, 1]} : vector<8x128xf32> to vector<8x32xf32>
    %304 = vector.extract_strided_slice %302 {offsets = [0, 32], sizes = [8, 32], strides = [1, 1]} : vector<8x128xf32> to vector<8x32xf32>
    %305 = vector.extract_strided_slice %302 {offsets = [0, 64], sizes = [8, 32], strides = [1, 1]} : vector<8x128xf32> to vector<8x32xf32>
    %306 = vector.extract_strided_slice %302 {offsets = [0, 96], sizes = [8, 32], strides = [1, 1]} : vector<8x128xf32> to vector<8x32xf32>
    %cst_69 = arith.constant 2.000000e+00 : f32
    %307 = vector.broadcast %cst_69 : f32 to vector<8x32xf32>
    %308 = arith.mulf %307, %306 : vector<8x32xf32>
    %cst_70 = arith.constant 1.000000e+00 : f32
    %309 = vector.broadcast %cst_70 : f32 to vector<8x32xf32>
    %310 = arith.subf %308, %309 : vector<8x32xf32>
    %311 = arith.mulf %304, %291 : vector<8x32xf32>
    %312 = arith.mulf %303, %310 : vector<8x32xf32>
    %313 = arith.addf %311, %312 : vector<8x32xf32>
    %314 = math.tanh %313 : vector<8x32xf32>
    %315 = arith.mulf %305, %314 : vector<8x32xf32>
    %316 = vector.extract_strided_slice %203 {offsets = [5, 0, 0], sizes = [1, 8, 128], strides = [1, 1, 1]} : vector<8x8x128xf32> to vector<1x8x128xf32>
    %317 = vector.shape_cast %316 : vector<1x8x128xf32> to vector<8x128xf32>
    %cst_71 = arith.constant dense<0.000000e+00> : vector<8x128xf32>
    %318 = tpu.matmul %315, %197, %cst_71 {dimension_numbers = #tpu.dot_dimension_numbers<[1], [0], [0], [1], [0, 0, 1, 1], [], []>} : vector<8x32xf32>, vector<32x128xf32>, vector<8x128xf32> -> vector<8x128xf32>
    %319 = arith.addf %317, %318 : vector<8x128xf32>
    %320 = arith.negf %319 : vector<8x128xf32>
    %321 = math.exp %320 : vector<8x128xf32>
    %cst_72 = arith.constant 1.000000e+00 : f32
    %322 = vector.broadcast %cst_72 : f32 to vector<8x128xf32>
    %323 = arith.addf %322, %321 : vector<8x128xf32>
    %324 = arith.divf %322, %323 : vector<8x128xf32>
    %325 = vector.extract_strided_slice %324 {offsets = [0, 0], sizes = [8, 32], strides = [1, 1]} : vector<8x128xf32> to vector<8x32xf32>
    %326 = vector.extract_strided_slice %324 {offsets = [0, 32], sizes = [8, 32], strides = [1, 1]} : vector<8x128xf32> to vector<8x32xf32>
    %327 = vector.extract_strided_slice %324 {offsets = [0, 64], sizes = [8, 32], strides = [1, 1]} : vector<8x128xf32> to vector<8x32xf32>
    %328 = vector.extract_strided_slice %324 {offsets = [0, 96], sizes = [8, 32], strides = [1, 1]} : vector<8x128xf32> to vector<8x32xf32>
    %cst_73 = arith.constant 2.000000e+00 : f32
    %329 = vector.broadcast %cst_73 : f32 to vector<8x32xf32>
    %330 = arith.mulf %329, %328 : vector<8x32xf32>
    %cst_74 = arith.constant 1.000000e+00 : f32
    %331 = vector.broadcast %cst_74 : f32 to vector<8x32xf32>
    %332 = arith.subf %330, %331 : vector<8x32xf32>
    %333 = arith.mulf %326, %313 : vector<8x32xf32>
    %334 = arith.mulf %325, %332 : vector<8x32xf32>
    %335 = arith.addf %333, %334 : vector<8x32xf32>
    %336 = math.tanh %335 : vector<8x32xf32>
    %337 = arith.mulf %327, %336 : vector<8x32xf32>
    %338 = vector.extract_strided_slice %203 {offsets = [6, 0, 0], sizes = [1, 8, 128], strides = [1, 1, 1]} : vector<8x8x128xf32> to vector<1x8x128xf32>
    %339 = vector.shape_cast %338 : vector<1x8x128xf32> to vector<8x128xf32>
    %cst_75 = arith.constant dense<0.000000e+00> : vector<8x128xf32>
    %340 = tpu.matmul %337, %197, %cst_75 {dimension_numbers = #tpu.dot_dimension_numbers<[1], [0], [0], [1], [0, 0, 1, 1], [], []>} : vector<8x32xf32>, vector<32x128xf32>, vector<8x128xf32> -> vector<8x128xf32>
    %341 = arith.addf %339, %340 : vector<8x128xf32>
    %342 = arith.negf %341 : vector<8x128xf32>
    %343 = math.exp %342 : vector<8x128xf32>
    %cst_76 = arith.constant 1.000000e+00 : f32
    %344 = vector.broadcast %cst_76 : f32 to vector<8x128xf32>
    %345 = arith.addf %344, %343 : vector<8x128xf32>
    %346 = arith.divf %344, %345 : vector<8x128xf32>
    %347 = vector.extract_strided_slice %346 {offsets = [0, 0], sizes = [8, 32], strides = [1, 1]} : vector<8x128xf32> to vector<8x32xf32>
    %348 = vector.extract_strided_slice %346 {offsets = [0, 32], sizes = [8, 32], strides = [1, 1]} : vector<8x128xf32> to vector<8x32xf32>
    %349 = vector.extract_strided_slice %346 {offsets = [0, 64], sizes = [8, 32], strides = [1, 1]} : vector<8x128xf32> to vector<8x32xf32>
    %350 = vector.extract_strided_slice %346 {offsets = [0, 96], sizes = [8, 32], strides = [1, 1]} : vector<8x128xf32> to vector<8x32xf32>
    %cst_77 = arith.constant 2.000000e+00 : f32
    %351 = vector.broadcast %cst_77 : f32 to vector<8x32xf32>
    %352 = arith.mulf %351, %350 : vector<8x32xf32>
    %cst_78 = arith.constant 1.000000e+00 : f32
    %353 = vector.broadcast %cst_78 : f32 to vector<8x32xf32>
    %354 = arith.subf %352, %353 : vector<8x32xf32>
    %355 = arith.mulf %348, %335 : vector<8x32xf32>
    %356 = arith.mulf %347, %354 : vector<8x32xf32>
    %357 = arith.addf %355, %356 : vector<8x32xf32>
    %358 = math.tanh %357 : vector<8x32xf32>
    %359 = arith.mulf %349, %358 : vector<8x32xf32>
    %360 = vector.extract_strided_slice %203 {offsets = [7, 0, 0], sizes = [1, 8, 128], strides = [1, 1, 1]} : vector<8x8x128xf32> to vector<1x8x128xf32>
    %361 = vector.shape_cast %360 : vector<1x8x128xf32> to vector<8x128xf32>
    %cst_79 = arith.constant dense<0.000000e+00> : vector<8x128xf32>
    %362 = tpu.matmul %359, %197, %cst_79 {dimension_numbers = #tpu.dot_dimension_numbers<[1], [0], [0], [1], [0, 0, 1, 1], [], []>} : vector<8x32xf32>, vector<32x128xf32>, vector<8x128xf32> -> vector<8x128xf32>
    %363 = arith.addf %361, %362 : vector<8x128xf32>
    %364 = arith.negf %363 : vector<8x128xf32>
    %365 = math.exp %364 : vector<8x128xf32>
    %cst_80 = arith.constant 1.000000e+00 : f32
    %366 = vector.broadcast %cst_80 : f32 to vector<8x128xf32>
    %367 = arith.addf %366, %365 : vector<8x128xf32>
    %368 = arith.divf %366, %367 : vector<8x128xf32>
    %369 = vector.extract_strided_slice %368 {offsets = [0, 0], sizes = [8, 32], strides = [1, 1]} : vector<8x128xf32> to vector<8x32xf32>
    %370 = vector.extract_strided_slice %368 {offsets = [0, 32], sizes = [8, 32], strides = [1, 1]} : vector<8x128xf32> to vector<8x32xf32>
    %371 = vector.extract_strided_slice %368 {offsets = [0, 64], sizes = [8, 32], strides = [1, 1]} : vector<8x128xf32> to vector<8x32xf32>
    %372 = vector.extract_strided_slice %368 {offsets = [0, 96], sizes = [8, 32], strides = [1, 1]} : vector<8x128xf32> to vector<8x32xf32>
    %cst_81 = arith.constant 2.000000e+00 : f32
    %373 = vector.broadcast %cst_81 : f32 to vector<8x32xf32>
    %374 = arith.mulf %373, %372 : vector<8x32xf32>
    %cst_82 = arith.constant 1.000000e+00 : f32
    %375 = vector.broadcast %cst_82 : f32 to vector<8x32xf32>
    %376 = arith.subf %374, %375 : vector<8x32xf32>
    %377 = arith.mulf %370, %357 : vector<8x32xf32>
    %378 = arith.mulf %369, %376 : vector<8x32xf32>
    %379 = arith.addf %377, %378 : vector<8x32xf32>
    %380 = math.tanh %379 : vector<8x32xf32>
    %381 = arith.mulf %371, %380 : vector<8x32xf32>
    %c0_83 = arith.constant 0 : index
    %c0_84 = arith.constant 0 : index
    %382 = vector.load %arg8[%c0_83, %c0_84] : memref<32x128xf32, #tpu.memory_space<vmem>>, vector<32x128xf32>
    %c0_85 = arith.constant 0 : index
    %c0_86 = arith.constant 0 : index
    %383 = vector.load %arg9[%c0_85, %c0_86] : memref<1x128xf32, #tpu.memory_space<vmem>>, vector<1x128xf32>
    %cst_87 = arith.constant dense<0.000000e+00> : vector<8x128xf32>
    %384 = tpu.matmul %381, %382, %cst_87 {dimension_numbers = #tpu.dot_dimension_numbers<[1], [0], [0], [1], [0, 0, 1, 1], [], []>} : vector<8x32xf32>, vector<32x128xf32>, vector<8x128xf32> -> vector<8x128xf32>
    %385 = vector.broadcast %383 : vector<1x128xf32> to vector<8x128xf32>
    %386 = arith.addf %384, %385 : vector<8x128xf32>
    %387 = arith.negf %386 : vector<8x128xf32>
    %388 = math.exp %387 : vector<8x128xf32>
    %cst_88 = arith.constant 1.000000e+00 : f32
    %389 = vector.broadcast %cst_88 : f32 to vector<8x128xf32>
    %390 = arith.addf %389, %388 : vector<8x128xf32>
    %391 = arith.divf %389, %390 : vector<8x128xf32>
    %c0_89 = arith.constant 0 : index
    %c0_90 = arith.constant 0 : index
    %392 = vector.load %arg10[%c0_89, %c0_90] : memref<8x128xf32, #tpu.memory_space<vmem>>, vector<8x128xf32>
    tpu.vector_store %arg10[%c0_89, %c0_90], %391 {strides = array<i32>} : memref<8x128xf32, #tpu.memory_space<vmem>>, vector<8x128xf32>,
    return
  }
  func.func @transform_0(%arg0: i32) -> (i32, i32, i32) {
    %c0_i32 = arith.constant 0 : i32
    %c0_i32_0 = arith.constant 0 : i32
    %c0_i32_1 = arith.constant 0 : i32
    return %c0_i32, %arg0, %c0_i32_0 : i32, i32, i32
  }
  func.func @transform_1(%arg0: i32) -> (i32, i32) {
    %c0_i32 = arith.constant 0 : i32
    %c0_i32_0 = arith.constant 0 : i32
    %c0_i32_1 = arith.constant 0 : i32
    return %c0_i32, %c0_i32_0 : i32, i32
  }
  func.func @transform_2(%arg0: i32) -> (i32, i32) {
    %c0_i32 = arith.constant 0 : i32
    %c0_i32_0 = arith.constant 0 : i32
    %c0_i32_1 = arith.constant 0 : i32
    return %c0_i32, %c0_i32_0 : i32, i32
  }
  func.func @transform_3(%arg0: i32) -> (i32, i32) {
    %c0_i32 = arith.constant 0 : i32
    %c0_i32_0 = arith.constant 0 : i32
    %c0_i32_1 = arith.constant 0 : i32
    return %c0_i32, %c0_i32_0 : i32, i32
  }
  func.func @transform_4(%arg0: i32) -> (i32, i32) {
    %c0_i32 = arith.constant 0 : i32
    %c0_i32_0 = arith.constant 0 : i32
    %c0_i32_1 = arith.constant 0 : i32
    return %c0_i32, %c0_i32_0 : i32, i32
  }
  func.func @transform_5(%arg0: i32) -> (i32, i32) {
    %c0_i32 = arith.constant 0 : i32
    %c0_i32_0 = arith.constant 0 : i32
    %c0_i32_1 = arith.constant 0 : i32
    return %c0_i32, %c0_i32_0 : i32, i32
  }
  func.func @transform_6(%arg0: i32) -> (i32, i32) {
    %c0_i32 = arith.constant 0 : i32
    %c0_i32_0 = arith.constant 0 : i32
    %c0_i32_1 = arith.constant 0 : i32
    return %c0_i32, %c0_i32_0 : i32, i32
  }
  func.func @transform_7(%arg0: i32) -> (i32, i32) {
    %c0_i32 = arith.constant 0 : i32
    %c0_i32_0 = arith.constant 0 : i32
    %c0_i32_1 = arith.constant 0 : i32
    return %c0_i32, %c0_i32_0 : i32, i32
  }
  func.func @transform_8(%arg0: i32) -> (i32, i32) {
    %c0_i32 = arith.constant 0 : i32
    %c0_i32_0 = arith.constant 0 : i32
    %c0_i32_1 = arith.constant 0 : i32
    return %c0_i32, %c0_i32_0 : i32, i32
  }
  func.func @transform_9(%arg0: i32) -> (i32, i32) {
    %c0_i32 = arith.constant 0 : i32
    %c0_i32_0 = arith.constant 0 : i32
    return %arg0, %c0_i32 : i32, i32
  }
}

</mosaic_0001>

<llo_original>
// kernel: cyclone_predictor_forward.1
$region0: #{cyclone_predictor_forward.1}
  #allocation0 [shape = 'u32[]', space=smem, size = 0x4, offset = 0x4, fixed_abs, tag = 'smem constant byte address 0x4 - core index']
  #allocation1 [shape = 'u32[144,128]{1,0:T(1,128)}', space=vmem, size = 0x12000, scoped, tag = 'internal scratch']
  %s0 = inlined_call_operand.vmem [shape: f32[8,8,4], index: 0, kind: input, shape index: {}]
  %s1 = inlined_call_operand.hbm [shape: f32[4,128], index: 1, kind: input, shape index: {}]
  %s2 = inlined_call_operand.vmem [shape: f32[32,128], index: 2, kind: input, shape index: {}]
  %s3 = inlined_call_operand.vmem [shape: f32[1,128], index: 3, kind: input, shape index: {}]
  %s4 = inlined_call_operand.vmem [shape: f32[32,128], index: 4, kind: input, shape index: {}]
  %s5 = inlined_call_operand.vmem [shape: f32[32,128], index: 5, kind: input, shape index: {}]
  %s6 = inlined_call_operand.vmem [shape: f32[1,128], index: 6, kind: input, shape index: {}]
  %s7 = inlined_call_operand.vmem [shape: f32[32,128], index: 7, kind: input, shape index: {}]
  %s8 = inlined_call_operand.vmem [shape: f32[1,128], index: 8, kind: input, shape index: {}]
  %s9 = inlined_call_operand.vmem [shape: f32[8,128], index: 9, kind: output, shape index: {}]
  %s10 = sld [smem:[#allocation0]]
  $region50: #{cyclone_predictor_forward.1} parent=0
    _
  %s12 = ssub.s32 1, %s10
  %s13 = scalar_select 0, %s12, %s10
  $region1: #{cyclone_predictor_forward.1} parent=0
    #allocation2 [shape = 'u8[2048]{0}', space=vmem, size = 0x800, scoped, tag = 'input window, operand 1, single buffered']
    #allocation3 [shape = 's32[1]{0}', space=sflag, size = 0x4, scoped, tag = 'scoped memory for cyclone_predictor_forward.1']
    %14 = vsyncpa [#allocation3], 0
    // Predicated region
    $region2: #{cyclone_predictor_forward.1} parent=1 // pred_check
      _
    $region3: #{cyclone_predictor_forward.1} parent=1 // pred_check_branch
      %16 = sbr.rel (0) target = $region5
    $region4: #{cyclone_predictor_forward.1} parent=1 // pred_region
      _
    $region5: #{cyclone_predictor_forward.1} parent=1 // pred_fallthru
      _
    // Predicated region
    $region6: #{cyclone_predictor_forward.1} parent=1 // pred_check
      _
    $region7: #{cyclone_predictor_forward.1} parent=1 // pred_check_branch
      %18 = sbr.rel (0) target = $region9
    $region8: #{cyclone_predictor_forward.1} parent=1 // pred_region
      %s20 = ssub.s32 64, 64
      %21 = vsyncadd [#allocation3], %s20
      %s23 = sshll.u32 [#allocation2], 4
      %s24 = int_to_ptr.vmem [resolvable:$true] %s23
      %26 = dma.hbm_to_vmem [thread:$0]  %s1, 64, %s24, [#allocation3]
    $region9: #{cyclone_predictor_forward.1} parent=1 // pred_fallthru
      _
    // Predicated region
    $region10: #{cyclone_predictor_forward.1} parent=1 // pred_check
      _
    $region11: #{cyclone_predictor_forward.1} parent=1 // pred_check_branch
      %28 = sbr.rel (0) target = $region13
    $region12: #{cyclone_predictor_forward.1} parent=1 // pred_region
      _
    $region13: #{cyclone_predictor_forward.1} parent=1 // pred_fallthru
      _
    // Predicated region
    $region14: #{cyclone_predictor_forward.1} parent=1 // pred_check
      _
    $region15: #{cyclone_predictor_forward.1} parent=1 // pred_check_branch
      %30 = sbr.rel (0) target = $region17
    $region16: #{cyclone_predictor_forward.1} parent=1 // pred_region
      _
    $region17: #{cyclone_predictor_forward.1} parent=1 // pred_fallthru
      _
    // Predicated region
    $region18: #{cyclone_predictor_forward.1} parent=1 // pred_check
      _
    $region19: #{cyclone_predictor_forward.1} parent=1 // pred_check_branch
      %32 = sbr.rel (0) target = $region21
    $region20: #{cyclone_predictor_forward.1} parent=1 // pred_region
      _
    $region21: #{cyclone_predictor_forward.1} parent=1 // pred_fallthru
      _
    // Predicated region
    $region22: #{cyclone_predictor_forward.1} parent=1 // pred_check
      _
    $region23: #{cyclone_predictor_forward.1} parent=1 // pred_check_branch
      %34 = sbr.rel (0) target = $region25
    $region24: #{cyclone_predictor_forward.1} parent=1 // pred_region
      _
    $region25: #{cyclone_predictor_forward.1} parent=1 // pred_fallthru
      _
    // Predicated region
    $region26: #{cyclone_predictor_forward.1} parent=1 // pred_check
      _
    $region27: #{cyclone_predictor_forward.1} parent=1 // pred_check_branch
      %36 = sbr.rel (0) target = $region29
    $region28: #{cyclone_predictor_forward.1} parent=1 // pred_region
      _
    $region29: #{cyclone_predictor_forward.1} parent=1 // pred_fallthru
      _
    // Predicated region
    $region30: #{cyclone_predictor_forward.1} parent=1 // pred_check
      _
    $region31: #{cyclone_predictor_forward.1} parent=1 // pred_check_branch
      %38 = sbr.rel (0) target = $region33
    $region32: #{cyclone_predictor_forward.1} parent=1 // pred_region
      _
    $region33: #{cyclone_predictor_forward.1} parent=1 // pred_fallthru
      _
    // Predicated region
    $region34: #{cyclone_predictor_forward.1} parent=1 // pred_check
      _
    $region35: #{cyclone_predictor_forward.1} parent=1 // pred_check_branch
      %40 = sbr.rel (0) target = $region37
    $region36: #{cyclone_predictor_forward.1} parent=1 // pred_region
      _
    $region37: #{cyclone_predictor_forward.1} parent=1 // pred_fallthru
      _
    // Predicated region
    $region38: #{cyclone_predictor_forward.1} parent=1 // pred_check
      _
    $region39: #{cyclone_predictor_forward.1} parent=1 // pred_check_branch
      %42 = sbr.rel (0) target = $region41
    $region40: #{cyclone_predictor_forward.1} parent=1 // pred_region
      %43 = dma.done [#allocation3], 64
    $region41: #{cyclone_predictor_forward.1} parent=1 // pred_fallthru
      _
    %v44 = vld [vmem:[%s0] sm:$0xff]
    %v45 = vld [vmem:[%s0 + $0x8] sm:$0xff]
    %v46 = vld [vmem:[%s0 + $0x10] sm:$0xff]
    %v47 = vld [vmem:[%s0 + $0x18] sm:$0xff]
    %v48 = vld [vmem:[%s0 + $0x20] sm:$0xff]
    %v49 = vld [vmem:[%s0 + $0x28] sm:$0xff]
    %v50 = vld [vmem:[%s0 + $0x30] sm:$0xff]
    %v51 = vld [vmem:[%s0 + $0x38] sm:$0xff]
    %v52 = vld [vmem:[#allocation2] sm:$0xf]
    %v53 = vld [vmem:[%s2] sm:$0xff]
    %v54 = vld [vmem:[%s2 + $0x8] sm:$0xff]
    %v55 = vld [vmem:[%s2 + $0x10] sm:$0xff]
    %v56 = vld [vmem:[%s2 + $0x18] sm:$0xff]
    %v57 = vld [vmem:[%s3] sm:$0x1]
    %v59 = vlaneseq
    %v60 = vshrl.u32 %v59, 7
    %v61 = vsub.s32 0, %v60
    %v62 = vrot.slane %v57, %v61
    %vm64 = vcmask 31744
    %v66 = vsel %vm64, %v44, 0
    %v69 = vsel %vm64, %v45, 0
    %v72 = vsel %vm64, %v46, 0
    %v75 = vsel %vm64, %v47, 0
    %v78 = vsel %vm64, %v48, 0
    %v81 = vsel %vm64, %v49, 0
    %v84 = vsel %vm64, %v50, 0
    %v87 = vsel %vm64, %v51, 0
    %vm89 = vcmask 1043456
    %v91 = vsel %vm89, %v52, 0
    %93 = vmatprep.subr.mxu0 0.0
    %94 = vmatpush1.msra.mxu0 %v91
    %95 = vmatprep.subr.mxu0 0.0
    %96 = vmatpush1.msra.mxu0 0.0
    %97 = vmatprep.subr.mxu0 0.0
    %98 = vmatpush1.msra.mxu0 0.0
    %99 = vmatprep.subr.mxu0 0.0
    %100 = vmatpush1.msra.mxu0 0.0
    %101 = vmatprep.subr.mxu0 0.0
    %102 = vmatpush1.msra.mxu0 0.0
    %103 = vmatprep.subr.mxu0 0.0
    %104 = vmatpush1.msra.mxu0 0.0
    %105 = vmatprep.subr.mxu0 0.0
    %106 = vmatpush1.msra.mxu0 0.0
    %107 = vmatprep.subr.mxu0 0.0
    %108 = vmatpush1.msra.mxu0 0.0
    %109 = vmatprep.subr.mxu0 0.0
    %110 = vmatpush1.msra.mxu0 0.0
    %111 = vmatprep.subr.mxu0 0.0
    %112 = vmatpush1.msra.mxu0 0.0
    %113 = vmatprep.subr.mxu0 0.0
    %114 = vmatpush1.msra.mxu0 0.0
    %115 = vmatprep.subr.mxu0 0.0
    %116 = vmatpush1.msra.mxu0 0.0
    %117 = vmatprep.subr.mxu0 0.0
    %118 = vmatpush1.msra.mxu0 0.0
    %119 = vmatprep.subr.mxu0 0.0
    %120 = vmatpush1.msra.mxu0 0.0
    %121 = vmatprep.subr.mxu0 0.0
    %122 = vmatpush1.msra.mxu0 0.0
    %123 = vmatprep.subr.mxu0 0.0
    %124 = vmatpush1.msra.mxu0 0.0
    %125 = vmatprep.subr.mxu0 0.0
    %126 = vmatpush1.msra.mxu0 0.0
    %127 = vmatprep.subr.mxu0 0.0
    %128 = vmatpush1.msra.mxu0 0.0
    %129 = vmatprep.subr.mxu0 0.0
    %130 = vmatpush1.msra.mxu0 0.0
    %131 = vmatprep.subr.mxu0 0.0
    %132 = vmatpush1.msra.mxu0 0.0
    %133 = vmatprep.subr.mxu0 0.0
    %134 = vmatpush1.msra.mxu0 0.0
    %135 = vmatprep.subr.mxu0 0.0
    %136 = vmatpush1.msra.mxu0 0.0
    %137 = vmatprep.subr.mxu0 0.0
    %138 = vmatpush1.msra.mxu0 0.0
    %139 = vmatprep.subr.mxu0 0.0
    %140 = vmatpush1.msra.mxu0 0.0
    %141 = vmatprep.subr.mxu0 0.0
    %142 = vmatpush1.msra.mxu0 0.0
    %143 = vmatprep.subr.mxu0 0.0
    %144 = vmatpush1.msra.mxu0 0.0
    %145 = vmatprep.subr.mxu0 0.0
    %146 = vmatpush1.msra.mxu0 0.0
    %147 = vmatprep.subr.mxu0 0.0
    %148 = vmatpush1.msra.mxu0 0.0
    %149 = vmatprep.subr.mxu0 0.0
    %150 = vmatpush1.msra.mxu0 0.0
    %151 = vmatprep.subr.mxu0 0.0
    %152 = vmatpush1.msra.mxu0 0.0
    %153 = vmatprep.subr.mxu0 0.0
    %154 = vmatpush1.msra.mxu0 0.0
    %155 = vmatprep.subr.mxu0 0.0
    %156 = vmatpush1.msra.mxu0 0.0
    %157 = vmatprep.mubr.f32.mxu0 0.0
    %158 = vmatmul.mubr.f32.gmra.mrb[0].mxu0 %v66
    %v159 = vpop.f32.mrb[0].mxu0
    %v160 = vadd.f32 %v62, %v159
    %v161 = vpop.f32.mrb[0].mxu0
    %162 = vmatprep.mubr.f32.mxu0 0.0
    %163 = vmatmul.mubr.f32.gmra.mrb[0].mxu0 %v69
    %v164 = vpop.f32.mrb[0].mxu0
    %v165 = vadd.f32 %v62, %v164
    %v166 = vpop.f32.mrb[0].mxu0
    %167 = vmatprep.mubr.f32.mxu0 0.0
    %168 = vmatmul.mubr.f32.gmra.mrb[0].mxu0 %v72
    %v169 = vpop.f32.mrb[0].mxu0
    %v170 = vadd.f32 %v62, %v169
    %v171 = vpop.f32.mrb[0].mxu0
    %172 = vmatprep.mubr.f32.mxu0 0.0
    %173 = vmatmul.mubr.f32.gmra.mrb[0].mxu0 %v75
    %v174 = vpop.f32.mrb[0].mxu0
    %v175 = vadd.f32 %v62, %v174
    %v176 = vpop.f32.mrb[0].mxu0
    %177 = vmatprep.mubr.f32.mxu0 0.0
    %178 = vmatmul.mubr.f32.gmra.mrb[0].mxu0 %v78
    %v179 = vpop.f32.mrb[0].mxu0
    %v180 = vadd.f32 %v62, %v179
    %v181 = vpop.f32.mrb[0].mxu0
    %182 = vmatprep.mubr.f32.mxu0 0.0
    %183 = vmatmul.mubr.f32.gmra.mrb[0].mxu0 %v81
    %v184 = vpop.f32.mrb[0].mxu0
    %v185 = vadd.f32 %v62, %v184
    %v186 = vpop.f32.mrb[0].mxu0
    %187 = vmatprep.mubr.f32.mxu0 0.0
    %188 = vmatmul.mubr.f32.gmra.mrb[0].mxu0 %v84
    %v189 = vpop.f32.mrb[0].mxu0
    %v190 = vadd.f32 %v62, %v189
    %v191 = vpop.f32.mrb[0].mxu0
    %192 = vmatprep.mubr.f32.mxu0 0.0
    %193 = vmatmul.mubr.f32.gmra.mrb[0].mxu0 %v87
    %v194 = vpop.f32.mrb[0].mxu0
    %v195 = vadd.f32 %v62, %v194
    %v196 = vpop.f32.mrb[0].mxu0
    %197 = vdwg.mxu0
    %vm198 = vcmask 261120
    %v200 = vsel %vm198, 0.0, 0
    %202 = vmatprep.subr.mxu0 0.0
    %203 = vmatpush1.msra.mxu0 %v53
    %204 = vmatprep.subr.mxu0 0.0
    %205 = vmatpush1.msra.mxu0 %v54
    %206 = vmatprep.subr.mxu0 0.0
    %207 = vmatpush1.msra.mxu0 %v55
    %208 = vmatprep.subr.mxu0 0.0
    %209 = vmatpush1.msra.mxu0 %v56
    %210 = vmatprep.subr.mxu0 0.0
    %211 = vmatpush1.msra.mxu0 0.0
    %212 = vmatprep.subr.mxu0 0.0
    %213 = vmatpush1.msra.mxu0 0.0
    %214 = vmatprep.subr.mxu0 0.0
    %215 = vmatpush1.msra.mxu0 0.0
    %216 = vmatprep.subr.mxu0 0.0
    %217 = vmatpush1.msra.mxu0 0.0
    %218 = vmatprep.subr.mxu0 0.0
    %219 = vmatpush1.msra.mxu0 0.0
    %220 = vmatprep.subr.mxu0 0.0
    %221 = vmatpush1.msra.mxu0 0.0
    %222 = vmatprep.subr.mxu0 0.0
    %223 = vmatpush1.msra.mxu0 0.0
    %224 = vmatprep.subr.mxu0 0.0
    %225 = vmatpush1.msra.mxu0 0.0
    %226 = vmatprep.subr.mxu0 0.0
    %227 = vmatpush1.msra.mxu0 0.0
    %228 = vmatprep.subr.mxu0 0.0
    %229 = vmatpush1.msra.mxu0 0.0
    %230 = vmatprep.subr.mxu0 0.0
    %231 = vmatpush1.msra.mxu0 0.0
    %232 = vmatprep.subr.mxu0 0.0
    %233 = vmatpush1.msra.mxu0 0.0
    %234 = vmatprep.subr.mxu0 0.0
    %235 = vmatpush1.msra.mxu0 0.0
    %236 = vmatprep.subr.mxu0 0.0
    %237 = vmatpush1.msra.mxu0 0.0
    %238 = vmatprep.subr.mxu0 0.0
    %239 = vmatpush1.msra.mxu0 0.0
    %240 = vmatprep.subr.mxu0 0.0
    %241 = vmatpush1.msra.mxu0 0.0
    %242 = vmatprep.subr.mxu0 0.0
    %243 = vmatpush1.msra.mxu0 0.0
    %244 = vmatprep.subr.mxu0 0.0
    %245 = vmatpush1.msra.mxu0 0.0
    %246 = vmatprep.subr.mxu0 0.0
    %247 = vmatpush1.msra.mxu0 0.0
    %248 = vmatprep.subr.mxu0 0.0
    %249 = vmatpush1.msra.mxu0 0.0
    %250 = vmatprep.subr.mxu0 0.0
    %251 = vmatpush1.msra.mxu0 0.0
    %252 = vmatprep.subr.mxu0 0.0
    %253 = vmatpush1.msra.mxu0 0.0
    %254 = vmatprep.subr.mxu0 0.0
    %255 = vmatpush1.msra.mxu0 0.0
    %256 = vmatprep.subr.mxu0 0.0
    %257 = vmatpush1.msra.mxu0 0.0
    %258 = vmatprep.subr.mxu0 0.0
    %259 = vmatpush1.msra.mxu0 0.0
    %260 = vmatprep.subr.mxu0 0.0
    %261 = vmatpush1.msra.mxu0 0.0
    %262 = vmatprep.subr.mxu0 0.0
    %263 = vmatpush1.msra.mxu0 0.0
    %264 = vmatprep.subr.mxu0 0.0
    %265 = vmatpush1.msra.mxu0 0.0
    %266 = vmatprep.mubr.f32.mxu0 0.0
    %267 = vmatmul.mubr.f32.gmra.mrb[0].mxu0 %v200
    %v268 = vpop.f32.mrb[0].mxu0
    %v269 = vadd.f32 0.0, %v268
    %v270 = vpop.f32.mrb[0].mxu0
    %271 = vdwg.mxu0
    %v272 = vadd.f32 %v160, %v269
    %v273 = vxor.u32 %v272, 2147483648
    %v274 = vmul.f32 %v273, 1.442695
    %v275 = vpow.pop %v274
    %v276 = vadd.f32 %v275, 1.0
    %v277 = vrcp.pop %v276
    %v278 = vmul.f32 1.0, %v277
    %v279 = vmul.f32 %v278, 2.0
    %v280 = vsub.f32 %v279, 1.0
    %v281 = vmul.f32 %v278, 0.0
    %283 = vrot.lane.b32.xlu0 %v280, 32
    %v284 = vpop.permute.xlu0 %283
    %v286 = vmul.f32 %v278, %v284
    %288 = vrot.lane.b32.xlu0 %v286, 32
    %v289 = vpop.permute.xlu0 %288
    %v291 = vadd.f32 %v281, %v289
    %v292 = vtanh.pop %v291
    %294 = vrot.lane.b32.xlu0 %v292, 32
    %v295 = vpop.permute.xlu0 %294
    %v297 = vmul.f32 %v278, %v295
    %299 = vrot.lane.b32.xlu0 %v297, 64
    %v300 = vpop.permute.xlu0 %299
    %v301 = vsel %vm198, %v300, 0
    %303 = vmatprep.subr.mxu0 0.0
    %304 = vmatpush1.msra.mxu0 %v53
    %305 = vmatprep.subr.mxu0 0.0
    %306 = vmatpush1.msra.mxu0 %v54
    %307 = vmatprep.subr.mxu0 0.0
    %308 = vmatpush1.msra.mxu0 %v55
    %309 = vmatprep.subr.mxu0 0.0
    %310 = vmatpush1.msra.mxu0 %v56
    %311 = vmatprep.subr.mxu0 0.0
    %312 = vmatpush1.msra.mxu0 0.0
    %313 = vmatprep.subr.mxu0 0.0
    %314 = vmatpush1.msra.mxu0 0.0
    %315 = vmatprep.subr.mxu0 0.0
    %316 = vmatpush1.msra.mxu0 0.0
    %317 = vmatprep.subr.mxu0 0.0
    %318 = vmatpush1.msra.mxu0 0.0
    %319 = vmatprep.subr.mxu0 0.0
    %320 = vmatpush1.msra.mxu0 0.0
    %321 = vmatprep.subr.mxu0 0.0
    %322 = vmatpush1.msra.mxu0 0.0
    %323 = vmatprep.subr.mxu0 0.0
    %324 = vmatpush1.msra.mxu0 0.0
    %325 = vmatprep.subr.mxu0 0.0
    %326 = vmatpush1.msra.mxu0 0.0
    %327 = vmatprep.subr.mxu0 0.0
    %328 = vmatpush1.msra.mxu0 0.0
    %329 = vmatprep.subr.mxu0 0.0
    %330 = vmatpush1.msra.mxu0 0.0
    %331 = vmatprep.subr.mxu0 0.0
    %332 = vmatpush1.msra.mxu0 0.0
    %333 = vmatprep.subr.mxu0 0.0
    %334 = vmatpush1.msra.mxu0 0.0
    %335 = vmatprep.subr.mxu0 0.0
    %336 = vmatpush1.msra.mxu0 0.0
    %337 = vmatprep.subr.mxu0 0.0
    %338 = vmatpush1.msra.mxu0 0.0
    %339 = vmatprep.subr.mxu0 0.0
    %340 = vmatpush1.msra.mxu0 0.0
    %341 = vmatprep.subr.mxu0 0.0
    %342 = vmatpush1.msra.mxu0 0.0
    %343 = vmatprep.subr.mxu0 0.0
    %344 = vmatpush1.msra.mxu0 0.0
    %345 = vmatprep.subr.mxu0 0.0
    %346 = vmatpush1.msra.mxu0 0.0
    %347 = vmatprep.subr.mxu0 0.0
    %348 = vmatpush1.msra.mxu0 0.0
    %349 = vmatprep.subr.mxu0 0.0
    %350 = vmatpush1.msra.mxu0 0.0
    %351 = vmatprep.subr.mxu0 0.0
    %352 = vmatpush1.msra.mxu0 0.0
    %353 = vmatprep.subr.mxu0 0.0
    %354 = vmatpush1.msra.mxu0 0.0
    %355 = vmatprep.subr.mxu0 0.0
    %356 = vmatpush1.msra.mxu0 0.0
    %357 = vmatprep.subr.mxu0 0.0
    %358 = vmatpush1.msra.mxu0 0.0
    %359 = vmatprep.subr.mxu0 0.0
    %360 = vmatpush1.msra.mxu0 0.0
    %361 = vmatprep.subr.mxu0 0.0
    %362 = vmatpush1.msra.mxu0 0.0
    %363 = vmatprep.subr.mxu0 0.0
    %364 = vmatpush1.msra.mxu0 0.0
    %365 = vmatprep.subr.mxu0 0.0
    %366 = vmatpush1.msra.mxu0 0.0
    %367 = vmatprep.mubr.f32.mxu0 0.0
    %368 = vmatmul.mubr.f32.gmra.mrb[0].mxu0 %v301
    %v369 = vpop.f32.mrb[0].mxu0
    %v370 = vadd.f32 0.0, %v369
    %v371 = vpop.f32.mrb[0].mxu0
    %372 = vdwg.mxu0
    %v373 = vadd.f32 %v165, %v370
    %v374 = vxor.u32 %v373, 2147483648
    %v375 = vmul.f32 %v374, 1.442695
    %v376 = vpow.pop %v375
    %v377 = vadd.f32 %v376, 1.0
    %v378 = vrcp.pop %v377
    %v379 = vmul.f32 1.0, %v378
    %v380 = vmul.f32 %v379, 2.0
    %v381 = vsub.f32 %v380, 1.0
    %v382 = vmul.f32 %v379, %v291
    %384 = vrot.lane.b32.xlu0 %v381, 32
    %v385 = vpop.permute.xlu0 %384
    %v387 = vmul.f32 %v379, %v385
    %389 = vrot.lane.b32.xlu0 %v387, 32
    %v390 = vpop.permute.xlu0 %389
    %v392 = vadd.f32 %v382, %v390
    %v393 = vtanh.pop %v392
    %395 = vrot.lane.b32.xlu0 %v393, 32
    %v396 = vpop.permute.xlu0 %395
    %v398 = vmul.f32 %v379, %v396
    %400 = vrot.lane.b32.xlu0 %v398, 64
    %v401 = vpop.permute.xlu0 %400
    %v402 = vsel %vm198, %v401, 0
    %404 = vmatprep.subr.mxu0 0.0
    %405 = vmatpush1.msra.mxu0 %v53
    %406 = vmatprep.subr.mxu0 0.0
    %407 = vmatpush1.msra.mxu0 %v54
    %408 = vmatprep.subr.mxu0 0.0
    %409 = vmatpush1.msra.mxu0 %v55
    %410 = vmatprep.subr.mxu0 0.0
    %411 = vmatpush1.msra.mxu0 %v56
    %412 = vmatprep.subr.mxu0 0.0
    %413 = vmatpush1.msra.mxu0 0.0
    %414 = vmatprep.subr.mxu0 0.0
    %415 = vmatpush1.msra.mxu0 0.0
    %416 = vmatprep.subr.mxu0 0.0
    %417 = vmatpush1.msra.mxu0 0.0
    %418 = vmatprep.subr.mxu0 0.0
    %419 = vmatpush1.msra.mxu0 0.0
    %420 = vmatprep.subr.mxu0 0.0
    %421 = vmatpush1.msra.mxu0 0.0
    %422 = vmatprep.subr.mxu0 0.0
    %423 = vmatpush1.msra.mxu0 0.0
    %424 = vmatprep.subr.mxu0 0.0
    %425 = vmatpush1.msra.mxu0 0.0
    %426 = vmatprep.subr.mxu0 0.0
    %427 = vmatpush1.msra.mxu0 0.0
    %428 = vmatprep.subr.mxu0 0.0
    %429 = vmatpush1.msra.mxu0 0.0
    %430 = vmatprep.subr.mxu0 0.0
    %431 = vmatpush1.msra.mxu0 0.0
    %432 = vmatprep.subr.mxu0 0.0
    %433 = vmatpush1.msra.mxu0 0.0
    %434 = vmatprep.subr.mxu0 0.0
    %435 = vmatpush1.msra.mxu0 0.0
    %436 = vmatprep.subr.mxu0 0.0
    %437 = vmatpush1.msra.mxu0 0.0
    %438 = vmatprep.subr.mxu0 0.0
    %439 = vmatpush1.msra.mxu0 0.0
    %440 = vmatprep.subr.mxu0 0.0
    %441 = vmatpush1.msra.mxu0 0.0
    %442 = vmatprep.subr.mxu0 0.0
    %443 = vmatpush1.msra.mxu0 0.0
    %444 = vmatprep.subr.mxu0 0.0
    %445 = vmatpush1.msra.mxu0 0.0
    %446 = vmatprep.subr.mxu0 0.0
    %447 = vmatpush1.msra.mxu0 0.0
    %448 = vmatprep.subr.mxu0 0.0
    %449 = vmatpush1.msra.mxu0 0.0
    %450 = vmatprep.subr.mxu0 0.0
    %451 = vmatpush1.msra.mxu0 0.0
    %452 = vmatprep.subr.mxu0 0.0
    %453 = vmatpush1.msra.mxu0 0.0
    %454 = vmatprep.subr.mxu0 0.0
    %455 = vmatpush1.msra.mxu0 0.0
    %456 = vmatprep.subr.mxu0 0.0
    %457 = vmatpush1.msra.mxu0 0.0
    %458 = vmatprep.subr.mxu0 0.0
    %459 = vmatpush1.msra.mxu0 0.0
    %460 = vmatprep.subr.mxu0 0.0
    %461 = vmatpush1.msra.mxu0 0.0
    %462 = vmatprep.subr.mxu0 0.0
    %463 = vmatpush1.msra.mxu0 0.0
    %464 = vmatprep.subr.mxu0 0.0
    %465 = vmatpush1.msra.mxu0 0.0
    %466 = vmatprep.subr.mxu0 0.0
    %467 = vmatpush1.msra.mxu0 0.0
    %468 = vmatprep.mubr.f32.mxu0 0.0
    %469 = vmatmul.mubr.f32.gmra.mrb[0].mxu0 %v402
    %v470 = vpop.f32.mrb[0].mxu0
    %v471 = vadd.f32 0.0, %v470
    %v472 = vpop.f32.mrb[0].mxu0
    %473 = vdwg.mxu0
    %v474 = vadd.f32 %v170, %v471
    %v475 = vxor.u32 %v474, 2147483648
    %v476 = vmul.f32 %v475, 1.442695
    %v477 = vpow.pop %v476
    %v478 = vadd.f32 %v477, 1.0
    %v479 = vrcp.pop %v478
    %v480 = vmul.f32 1.0, %v479
    %v481 = vmul.f32 %v480, 2.0
    %v482 = vsub.f32 %v481, 1.0
    %v483 = vmul.f32 %v480, %v392
    %485 = vrot.lane.b32.xlu0 %v482, 32
    %v486 = vpop.permute.xlu0 %485
    %v488 = vmul.f32 %v480, %v486
    %490 = vrot.lane.b32.xlu0 %v488, 32
    %v491 = vpop.permute.xlu0 %490
    %v493 = vadd.f32 %v483, %v491
    %v494 = vtanh.pop %v493
    %496 = vrot.lane.b32.xlu0 %v494, 32
    %v497 = vpop.permute.xlu0 %496
    %v499 = vmul.f32 %v480, %v497
    %501 = vrot.lane.b32.xlu0 %v499, 64
    %v502 = vpop.permute.xlu0 %501
    %v503 = vsel %vm198, %v502, 0
    %505 = vmatprep.subr.mxu0 0.0
    %506 = vmatpush1.msra.mxu0 %v53
    %507 = vmatprep.subr.mxu0 0.0
    %508 = vmatpush1.msra.mxu0 %v54
    %509 = vmatprep.subr.mxu0 0.0
    %510 = vmatpush1.msra.mxu0 %v55
    %511 = vmatprep.subr.mxu0 0.0
    %512 = vmatpush1.msra.mxu0 %v56
    %513 = vmatprep.subr.mxu0 0.0
    %514 = vmatpush1.msra.mxu0 0.0
    %515 = vmatprep.subr.mxu0 0.0
    %516 = vmatpush1.msra.mxu0 0.0
    %517 = vmatprep.subr.mxu0 0.0
    %518 = vmatpush1.msra.mxu0 0.0
    %519 = vmatprep.subr.mxu0 0.0
    %520 = vmatpush1.msra.mxu0 0.0
    %521 = vmatprep.subr.mxu0 0.0
    %522 = vmatpush1.msra.mxu0 0.0
    %523 = vmatprep.subr.mxu0 0.0
    %524 = vmatpush1.msra.mxu0 0.0
    %525 = vmatprep.subr.mxu0 0.0
    %526 = vmatpush1.msra.mxu0 0.0
    %527 = vmatprep.subr.mxu0 0.0
    %528 = vmatpush1.msra.mxu0 0.0
    %529 = vmatprep.subr.mxu0 0.0
    %530 = vmatpush1.msra.mxu0 0.0
    %531 = vmatprep.subr.mxu0 0.0
    %532 = vmatpush1.msra.mxu0 0.0
    %533 = vmatprep.subr.mxu0 0.0
    %534 = vmatpush1.msra.mxu0 0.0
    %535 = vmatprep.subr.mxu0 0.0
    %536 = vmatpush1.msra.mxu0 0.0
    %537 = vmatprep.subr.mxu0 0.0
    %538 = vmatpush1.msra.mxu0 0.0
    %539 = vmatprep.subr.mxu0 0.0
    %540 = vmatpush1.msra.mxu0 0.0
    %541 = vmatprep.subr.mxu0 0.0
    %542 = vmatpush1.msra.mxu0 0.0
    %543 = vmatprep.subr.mxu0 0.0
    %544 = vmatpush1.msra.mxu0 0.0
    %545 = vmatprep.subr.mxu0 0.0
    %546 = vmatpush1.msra.mxu0 0.0
    %547 = vmatprep.subr.mxu0 0.0
    %548 = vmatpush1.msra.mxu0 0.0
    %549 = vmatprep.subr.mxu0 0.0
    %550 = vmatpush1.msra.mxu0 0.0
    %551 = vmatprep.subr.mxu0 0.0
    %552 = vmatpush1.msra.mxu0 0.0
    %553 = vmatprep.subr.mxu0 0.0
    %554 = vmatpush1.msra.mxu0 0.0
    %555 = vmatprep.subr.mxu0 0.0
    %556 = vmatpush1.msra.mxu0 0.0
    %557 = vmatprep.subr.mxu0 0.0
    %558 = vmatpush1.msra.mxu0 0.0
    %559 = vmatprep.subr.mxu0 0.0
    %560 = vmatpush1.msra.mxu0 0.0
    %561 = vmatprep.subr.mxu0 0.0
    %562 = vmatpush1.msra.mxu0 0.0
    %563 = vmatprep.subr.mxu0 0.0
    %564 = vmatpush1.msra.mxu0 0.0
    %565 = vmatprep.subr.mxu0 0.0
    %566 = vmatpush1.msra.mxu0 0.0
    %567 = vmatprep.subr.mxu0 0.0
    %568 = vmatpush1.msra.mxu0 0.0
    %569 = vmatprep.mubr.f32.mxu0 0.0
    %570 = vmatmul.mubr.f32.gmra.mrb[0].mxu0 %v503
    %v571 = vpop.f32.mrb[0].mxu0
    %v572 = vadd.f32 0.0, %v571
    %v573 = vpop.f32.mrb[0].mxu0
    %574 = vdwg.mxu0
    %v575 = vadd.f32 %v175, %v572
    %v576 = vxor.u32 %v575, 2147483648
    %v577 = vmul.f32 %v576, 1.442695
    %v578 = vpow.pop %v577
    %v579 = vadd.f32 %v578, 1.0
    %v580 = vrcp.pop %v579
    %v581 = vmul.f32 1.0, %v580
    %v582 = vmul.f32 %v581, 2.0
    %v583 = vsub.f32 %v582, 1.0
    %v584 = vmul.f32 %v581, %v493
    %586 = vrot.lane.b32.xlu0 %v583, 32
    %v587 = vpop.permute.xlu0 %586
    %v589 = vmul.f32 %v581, %v587
    %591 = vrot.lane.b32.xlu0 %v589, 32
    %v592 = vpop.permute.xlu0 %591
    %v594 = vadd.f32 %v584, %v592
    %v595 = vtanh.pop %v594
    %597 = vrot.lane.b32.xlu0 %v595, 32
    %v598 = vpop.permute.xlu0 %597
    %v600 = vmul.f32 %v581, %v598
    %602 = vrot.lane.b32.xlu0 %v600, 64
    %v603 = vpop.permute.xlu0 %602
    %v604 = vsel %vm198, %v603, 0
    %606 = vmatprep.subr.mxu0 0.0
    %607 = vmatpush1.msra.mxu0 %v53
    %608 = vmatprep.subr.mxu0 0.0
    %609 = vmatpush1.msra.mxu0 %v54
    %610 = vmatprep.subr.mxu0 0.0
    %611 = vmatpush1.msra.mxu0 %v55
    %612 = vmatprep.subr.mxu0 0.0
    %613 = vmatpush1.msra.mxu0 %v56
    %614 = vmatprep.subr.mxu0 0.0
    %615 = vmatpush1.msra.mxu0 0.0
    %616 = vmatprep.subr.mxu0 0.0
    %617 = vmatpush1.msra.mxu0 0.0
    %618 = vmatprep.subr.mxu0 0.0
    %619 = vmatpush1.msra.mxu0 0.0
    %620 = vmatprep.subr.mxu0 0.0
    %621 = vmatpush1.msra.mxu0 0.0
    %622 = vmatprep.subr.mxu0 0.0
    %623 = vmatpush1.msra.mxu0 0.0
    %624 = vmatprep.subr.mxu0 0.0
    %625 = vmatpush1.msra.mxu0 0.0
    %626 = vmatprep.subr.mxu0 0.0
    %627 = vmatpush1.msra.mxu0 0.0
    %628 = vmatprep.subr.mxu0 0.0
    %629 = vmatpush1.msra.mxu0 0.0
    %630 = vmatprep.subr.mxu0 0.0
    %631 = vmatpush1.msra.mxu0 0.0
    %632 = vmatprep.subr.mxu0 0.0
    %633 = vmatpush1.msra.mxu0 0.0
    %634 = vmatprep.subr.mxu0 0.0
    %635 = vmatpush1.msra.mxu0 0.0
    %636 = vmatprep.subr.mxu0 0.0
    %637 = vmatpush1.msra.mxu0 0.0
    %638 = vmatprep.subr.mxu0 0.0
    %639 = vmatpush1.msra.mxu0 0.0
    %640 = vmatprep.subr.mxu0 0.0
    %641 = vmatpush1.msra.mxu0 0.0
    %642 = vmatprep.subr.mxu0 0.0
    %643 = vmatpush1.msra.mxu0 0.0
    %644 = vmatprep.subr.mxu0 0.0
    %645 = vmatpush1.msra.mxu0 0.0
    %646 = vmatprep.subr.mxu0 0.0
    %647 = vmatpush1.msra.mxu0 0.0
    %648 = vmatprep.subr.mxu0 0.0
    %649 = vmatpush1.msra.mxu0 0.0
    %650 = vmatprep.subr.mxu0 0.0
    %651 = vmatpush1.msra.mxu0 0.0
    %652 = vmatprep.subr.mxu0 0.0
    %653 = vmatpush1.msra.mxu0 0.0
    %654 = vmatprep.subr.mxu0 0.0
    %655 = vmatpush1.msra.mxu0 0.0
    %656 = vmatprep.subr.mxu0 0.0
    %657 = vmatpush1.msra.mxu0 0.0
    %658 = vmatprep.subr.mxu0 0.0
    %659 = vmatpush1.msra.mxu0 0.0
    %660 = vmatprep.subr.mxu0 0.0
    %661 = vmatpush1.msra.mxu0 0.0
    %662 = vmatprep.subr.mxu0 0.0
    %663 = vmatpush1.msra.mxu0 0.0
    %664 = vmatprep.subr.mxu0 0.0
    %665 = vmatpush1.msra.mxu0 0.0
    %666 = vmatprep.subr.mxu0 0.0
    %667 = vmatpush1.msra.mxu0 0.0
    %668 = vmatprep.subr.mxu0 0.0
    %669 = vmatpush1.msra.mxu0 0.0
    %670 = vmatprep.mubr.f32.mxu0 0.0
    %671 = vmatmul.mubr.f32.gmra.mrb[0].mxu0 %v604
    %v672 = vpop.f32.mrb[0].mxu0
    %v673 = vadd.f32 0.0, %v672
    %v674 = vpop.f32.mrb[0].mxu0
    %675 = vdwg.mxu0
    %v676 = vadd.f32 %v180, %v673
    %v677 = vxor.u32 %v676, 2147483648
    %v678 = vmul.f32 %v677, 1.442695
    %v679 = vpow.pop %v678
    %v680 = vadd.f32 %v679, 1.0
    %v681 = vrcp.pop %v680
    %v682 = vmul.f32 1.0, %v681
    %v683 = vmul.f32 %v682, 2.0
    %v684 = vsub.f32 %v683, 1.0
    %v685 = vmul.f32 %v682, %v594
    %687 = vrot.lane.b32.xlu0 %v684, 32
    %v688 = vpop.permute.xlu0 %687
    %v690 = vmul.f32 %v682, %v688
    %692 = vrot.lane.b32.xlu0 %v690, 32
    %v693 = vpop.permute.xlu0 %692
    %v695 = vadd.f32 %v685, %v693
    %v696 = vtanh.pop %v695
    %698 = vrot.lane.b32.xlu0 %v696, 32
    %v699 = vpop.permute.xlu0 %698
    %v701 = vmul.f32 %v682, %v699
    %703 = vrot.lane.b32.xlu0 %v701, 64
    %v704 = vpop.permute.xlu0 %703
    %v705 = vsel %vm198, %v704, 0
    %707 = vmatprep.subr.mxu0 0.0
    %708 = vmatpush1.msra.mxu0 %v53
    %709 = vmatprep.subr.mxu0 0.0
    %710 = vmatpush1.msra.mxu0 %v54
    %711 = vmatprep.subr.mxu0 0.0
    %712 = vmatpush1.msra.mxu0 %v55
    %713 = vmatprep.subr.mxu0 0.0
    %714 = vmatpush1.msra.mxu0 %v56
    %715 = vmatprep.subr.mxu0 0.0
    %716 = vmatpush1.msra.mxu0 0.0
    %717 = vmatprep.subr.mxu0 0.0
    %718 = vmatpush1.msra.mxu0 0.0
    %719 = vmatprep.subr.mxu0 0.0
    %720 = vmatpush1.msra.mxu0 0.0
    %721 = vmatprep.subr.mxu0 0.0
    %722 = vmatpush1.msra.mxu0 0.0
    %723 = vmatprep.subr.mxu0 0.0
    %724 = vmatpush1.msra.mxu0 0.0
    %725 = vmatprep.subr.mxu0 0.0
    %726 = vmatpush1.msra.mxu0 0.0
    %727 = vmatprep.subr.mxu0 0.0
    %728 = vmatpush1.msra.mxu0 0.0
    %729 = vmatprep.subr.mxu0 0.0
    %730 = vmatpush1.msra.mxu0 0.0
    %731 = vmatprep.subr.mxu0 0.0
    %732 = vmatpush1.msra.mxu0 0.0
    %733 = vmatprep.subr.mxu0 0.0
    %734 = vmatpush1.msra.mxu0 0.0
    %735 = vmatprep.subr.mxu0 0.0
    %736 = vmatpush1.msra.mxu0 0.0
    %737 = vmatprep.subr.mxu0 0.0
    %738 = vmatpush1.msra.mxu0 0.0
    %739 = vmatprep.subr.mxu0 0.0
    %740 = vmatpush1.msra.mxu0 0.0
    %741 = vmatprep.subr.mxu0 0.0
    %742 = vmatpush1.msra.mxu0 0.0
    %743 = vmatprep.subr.mxu0 0.0
    %744 = vmatpush1.msra.mxu0 0.0
    %745 = vmatprep.subr.mxu0 0.0
    %746 = vmatpush1.msra.mxu0 0.0
    %747 = vmatprep.subr.mxu0 0.0
    %748 = vmatpush1.msra.mxu0 0.0
    %749 = vmatprep.subr.mxu0 0.0
    %750 = vmatpush1.msra.mxu0 0.0
    %751 = vmatprep.subr.mxu0 0.0
    %752 = vmatpush1.msra.mxu0 0.0
    %753 = vmatprep.subr.mxu0 0.0
    %754 = vmatpush1.msra.mxu0 0.0
    %755 = vmatprep.subr.mxu0 0.0
    %756 = vmatpush1.msra.mxu0 0.0
    %757 = vmatprep.subr.mxu0 0.0
    %758 = vmatpush1.msra.mxu0 0.0
    %759 = vmatprep.subr.mxu0 0.0
    %760 = vmatpush1.msra.mxu0 0.0
    %761 = vmatprep.subr.mxu0 0.0
    %762 = vmatpush1.msra.mxu0 0.0
    %763 = vmatprep.subr.mxu0 0.0
    %764 = vmatpush1.msra.mxu0 0.0
    %765 = vmatprep.subr.mxu0 0.0
    %766 = vmatpush1.msra.mxu0 0.0
    %767 = vmatprep.subr.mxu0 0.0
    %768 = vmatpush1.msra.mxu0 0.0
    %769 = vmatprep.subr.mxu0 0.0
    %770 = vmatpush1.msra.mxu0 0.0
    %771 = vmatprep.mubr.f32.mxu0 0.0
    %772 = vmatmul.mubr.f32.gmra.mrb[0].mxu0 %v705
    %v773 = vpop.f32.mrb[0].mxu0
    %v774 = vadd.f32 0.0, %v773
    %v775 = vpop.f32.mrb[0].mxu0
    %776 = vdwg.mxu0
    %v777 = vadd.f32 %v185, %v774
    %v778 = vxor.u32 %v777, 2147483648
    %v779 = vmul.f32 %v778, 1.442695
    %v780 = vpow.pop %v779
    %v781 = vadd.f32 %v780, 1.0
    %v782 = vrcp.pop %v781
    %v783 = vmul.f32 1.0, %v782
    %v784 = vmul.f32 %v783, 2.0
    %v785 = vsub.f32 %v784, 1.0
    %v786 = vmul.f32 %v783, %v695
    %788 = vrot.lane.b32.xlu0 %v785, 32
    %v789 = vpop.permute.xlu0 %788
    %v791 = vmul.f32 %v783, %v789
    %793 = vrot.lane.b32.xlu0 %v791, 32
    %v794 = vpop.permute.xlu0 %793
    %v796 = vadd.f32 %v786, %v794
    %v797 = vtanh.pop %v796
    %799 = vrot.lane.b32.xlu0 %v797, 32
    %v800 = vpop.permute.xlu0 %799
    %v802 = vmul.f32 %v783, %v800
    %804 = vrot.lane.b32.xlu0 %v802, 64
    %v805 = vpop.permute.xlu0 %804
    %v806 = vsel %vm198, %v805, 0
    %808 = vmatprep.subr.mxu0 0.0
    %809 = vmatpush1.msra.mxu0 %v53
    %810 = vmatprep.subr.mxu0 0.0
    %811 = vmatpush1.msra.mxu0 %v54
    %812 = vmatprep.subr.mxu0 0.0
    %813 = vmatpush1.msra.mxu0 %v55
    %814 = vmatprep.subr.mxu0 0.0
    %815 = vmatpush1.msra.mxu0 %v56
    %816 = vmatprep.subr.mxu0 0.0
    %817 = vmatpush1.msra.mxu0 0.0
    %818 = vmatprep.subr.mxu0 0.0
    %819 = vmatpush1.msra.mxu0 0.0
    %820 = vmatprep.subr.mxu0 0.0
    %821 = vmatpush1.msra.mxu0 0.0
    %822 = vmatprep.subr.mxu0 0.0
    %823 = vmatpush1.msra.mxu0 0.0
    %824 = vmatprep.subr.mxu0 0.0
    %825 = vmatpush1.msra.mxu0 0.0
    %826 = vmatprep.subr.mxu0 0.0
    %827 = vmatpush1.msra.mxu0 0.0
    %828 = vmatprep.subr.mxu0 0.0
    %829 = vmatpush1.msra.mxu0 0.0
    %830 = vmatprep.subr.mxu0 0.0
    %831 = vmatpush1.msra.mxu0 0.0
    %832 = vmatprep.subr.mxu0 0.0
    %833 = vmatpush1.msra.mxu0 0.0
    %834 = vmatprep.subr.mxu0 0.0
    %835 = vmatpush1.msra.mxu0 0.0
    %836 = vmatprep.subr.mxu0 0.0
    %837 = vmatpush1.msra.mxu0 0.0
    %838 = vmatprep.subr.mxu0 0.0
    %839 = vmatpush1.msra.mxu0 0.0
    %840 = vmatprep.subr.mxu0 0.0
    %841 = vmatpush1.msra.mxu0 0.0
    %842 = vmatprep.subr.mxu0 0.0
    %843 = vmatpush1.msra.mxu0 0.0
    %844 = vmatprep.subr.mxu0 0.0
    %845 = vmatpush1.msra.mxu0 0.0
    %846 = vmatprep.subr.mxu0 0.0
    %847 = vmatpush1.msra.mxu0 0.0
    %848 = vmatprep.subr.mxu0 0.0
    %849 = vmatpush1.msra.mxu0 0.0
    %850 = vmatprep.subr.mxu0 0.0
    %851 = vmatpush1.msra.mxu0 0.0
    %852 = vmatprep.subr.mxu0 0.0
    %853 = vmatpush1.msra.mxu0 0.0
    %854 = vmatprep.subr.mxu0 0.0
    %855 = vmatpush1.msra.mxu0 0.0
    %856 = vmatprep.subr.mxu0 0.0
    %857 = vmatpush1.msra.mxu0 0.0
    %858 = vmatprep.subr.mxu0 0.0
    %859 = vmatpush1.msra.mxu0 0.0
    %860 = vmatprep.subr.mxu0 0.0
    %861 = vmatpush1.msra.mxu0 0.0
    %862 = vmatprep.subr.mxu0 0.0
    %863 = vmatpush1.msra.mxu0 0.0
    %864 = vmatprep.subr.mxu0 0.0
    %865 = vmatpush1.msra.mxu0 0.0
    %866 = vmatprep.subr.mxu0 0.0
    %867 = vmatpush1.msra.mxu0 0.0
    %868 = vmatprep.subr.mxu0 0.0
    %869 = vmatpush1.msra.mxu0 0.0
    %870 = vmatprep.subr.mxu0 0.0
    %871 = vmatpush1.msra.mxu0 0.0
    %872 = vmatprep.mubr.f32.mxu0 0.0
    %873 = vmatmul.mubr.f32.gmra.mrb[0].mxu0 %v806
    %v874 = vpop.f32.mrb[0].mxu0
    %v875 = vadd.f32 0.0, %v874
    %v876 = vpop.f32.mrb[0].mxu0
    %877 = vdwg.mxu0
    %v878 = vadd.f32 %v190, %v875
    %v879 = vxor.u32 %v878, 2147483648
    %v880 = vmul.f32 %v879, 1.442695
    %v881 = vpow.pop %v880
    %v882 = vadd.f32 %v881, 1.0
    %v883 = vrcp.pop %v882
    %v884 = vmul.f32 1.0, %v883
    %v885 = vmul.f32 %v884, 2.0
    %v886 = vsub.f32 %v885, 1.0
    %v887 = vmul.f32 %v884, %v796
    %889 = vrot.lane.b32.xlu0 %v886, 32
    %v890 = vpop.permute.xlu0 %889
    %v892 = vmul.f32 %v884, %v890
    %894 = vrot.lane.b32.xlu0 %v892, 32
    %v895 = vpop.permute.xlu0 %894
    %v897 = vadd.f32 %v887, %v895
    %v898 = vtanh.pop %v897
    %900 = vrot.lane.b32.xlu0 %v898, 32
    %v901 = vpop.permute.xlu0 %900
    %v903 = vmul.f32 %v884, %v901
    %905 = vrot.lane.b32.xlu0 %v903, 64
    %v906 = vpop.permute.xlu0 %905
    %v907 = vsel %vm198, %v906, 0
    %909 = vmatprep.subr.mxu0 0.0
    %910 = vmatpush1.msra.mxu0 %v53
    %911 = vmatprep.subr.mxu0 0.0
    %912 = vmatpush1.msra.mxu0 %v54
    %913 = vmatprep.subr.mxu0 0.0
    %914 = vmatpush1.msra.mxu0 %v55
    %915 = vmatprep.subr.mxu0 0.0
    %916 = vmatpush1.msra.mxu0 %v56
    %917 = vmatprep.subr.mxu0 0.0
    %918 = vmatpush1.msra.mxu0 0.0
    %919 = vmatprep.subr.mxu0 0.0
    %920 = vmatpush1.msra.mxu0 0.0
    %921 = vmatprep.subr.mxu0 0.0
    %922 = vmatpush1.msra.mxu0 0.0
    %923 = vmatprep.subr.mxu0 0.0
    %924 = vmatpush1.msra.mxu0 0.0
    %925 = vmatprep.subr.mxu0 0.0
    %926 = vmatpush1.msra.mxu0 0.0
    %927 = vmatprep.subr.mxu0 0.0
    %928 = vmatpush1.msra.mxu0 0.0
    %929 = vmatprep.subr.mxu0 0.0
    %930 = vmatpush1.msra.mxu0 0.0
    %931 = vmatprep.subr.mxu0 0.0
    %932 = vmatpush1.msra.mxu0 0.0
    %933 = vmatprep.subr.mxu0 0.0
    %934 = vmatpush1.msra.mxu0 0.0
    %935 = vmatprep.subr.mxu0 0.0
    %936 = vmatpush1.msra.mxu0 0.0
    %937 = vmatprep.subr.mxu0 0.0
    %938 = vmatpush1.msra.mxu0 0.0
    %939 = vmatprep.subr.mxu0 0.0
    %940 = vmatpush1.msra.mxu0 0.0
    %941 = vmatprep.subr.mxu0 0.0
    %942 = vmatpush1.msra.mxu0 0.0
    %943 = vmatprep.subr.mxu0 0.0
    %944 = vmatpush1.msra.mxu0 0.0
    %945 = vmatprep.subr.mxu0 0.0
    %946 = vmatpush1.msra.mxu0 0.0
    %947 = vmatprep.subr.mxu0 0.0
    %948 = vmatpush1.msra.mxu0 0.0
    %949 = vmatprep.subr.mxu0 0.0
    %950 = vmatpush1.msra.mxu0 0.0
    %951 = vmatprep.subr.mxu0 0.0
    %952 = vmatpush1.msra.mxu0 0.0
    %953 = vmatprep.subr.mxu0 0.0
    %954 = vmatpush1.msra.mxu0 0.0
    %955 = vmatprep.subr.mxu0 0.0
    %956 = vmatpush1.msra.mxu0 0.0
    %957 = vmatprep.subr.mxu0 0.0
    %958 = vmatpush1.msra.mxu0 0.0
    %959 = vmatprep.subr.mxu0 0.0
    %960 = vmatpush1.msra.mxu0 0.0
    %961 = vmatprep.subr.mxu0 0.0
    %962 = vmatpush1.msra.mxu0 0.0
    %963 = vmatprep.subr.mxu0 0.0
    %964 = vmatpush1.msra.mxu0 0.0
    %965 = vmatprep.subr.mxu0 0.0
    %966 = vmatpush1.msra.mxu0 0.0
    %967 = vmatprep.subr.mxu0 0.0
    %968 = vmatpush1.msra.mxu0 0.0
    %969 = vmatprep.subr.mxu0 0.0
    %970 = vmatpush1.msra.mxu0 0.0
    %971 = vmatprep.subr.mxu0 0.0
    %972 = vmatpush1.msra.mxu0 0.0
    %973 = vmatprep.mubr.f32.mxu0 0.0
    %974 = vmatmul.mubr.f32.gmra.mrb[0].mxu0 %v907
    %v975 = vpop.f32.mrb[0].mxu0
    %v976 = vadd.f32 0.0, %v975
    %v977 = vpop.f32.mrb[0].mxu0
    %978 = vdwg.mxu0
    %v979 = vadd.f32 %v195, %v976
    %v980 = vxor.u32 %v979, 2147483648
    %v981 = vmul.f32 %v980, 1.442695
    %v982 = vpow.pop %v981
    %v983 = vadd.f32 %v982, 1.0
    %v984 = vrcp.pop %v983
    %v985 = vmul.f32 1.0, %v984
    %v986 = vmul.f32 %v985, 2.0
    %v987 = vsub.f32 %v986, 1.0
    %v988 = vmul.f32 %v985, %v897
    %990 = vrot.lane.b32.xlu0 %v987, 32
    %v991 = vpop.permute.xlu0 %990
    %v993 = vmul.f32 %v985, %v991
    %995 = vrot.lane.b32.xlu0 %v993, 32
    %v996 = vpop.permute.xlu0 %995
    %v998 = vadd.f32 %v988, %v996
    %v999 = vtanh.pop %v998
    %1001 = vrot.lane.b32.xlu0 %v999, 32
    %v1002 = vpop.permute.xlu0 %1001
    %v1004 = vmul.f32 %v985, %v1002
    %v1005 = vld [vmem:[%s4] sm:$0xff]
    %v1006 = vld [vmem:[%s4 + $0x8] sm:$0xff]
    %v1007 = vld [vmem:[%s4 + $0x10] sm:$0xff]
    %v1008 = vld [vmem:[%s4 + $0x18] sm:$0xff]
    %v1009 = vld [vmem:[%s5] sm:$0xff]
    %v1010 = vld [vmem:[%s5 + $0x8] sm:$0xff]
    %v1011 = vld [vmem:[%s5 + $0x10] sm:$0xff]
    %v1012 = vld [vmem:[%s5 + $0x18] sm:$0xff]
    %v1013 = vld [vmem:[%s6] sm:$0x1]
    %v1015 = vlaneseq
    %v1016 = vshrl.u32 %v1015, 7
    %v1017 = vsub.s32 0, %v1016
    %v1018 = vrot.slane %v1013, %v1017
    %1021 = vrot.lane.b32.xlu0 %v1004, 64
    %v1022 = vpop.permute.xlu0 %1021
    %v1023 = vsel %vm198, %v1022, 0
    %1025 = vmatprep.subr.mxu0 0.0
    %1026 = vmatpush1.msra.mxu0 %v1005
    %1027 = vmatprep.subr.mxu0 0.0
    %1028 = vmatpush1.msra.mxu0 %v1006
    %1029 = vmatprep.subr.mxu0 0.0
    %1030 = vmatpush1.msra.mxu0 %v1007
    %1031 = vmatprep.subr.mxu0 0.0
    %1032 = vmatpush1.msra.mxu0 %v1008
    %1033 = vmatprep.subr.mxu0 0.0
    %1034 = vmatpush1.msra.mxu0 0.0
    %1035 = vmatprep.subr.mxu0 0.0
    %1036 = vmatpush1.msra.mxu0 0.0
    %1037 = vmatprep.subr.mxu0 0.0
    %1038 = vmatpush1.msra.mxu0 0.0
    %1039 = vmatprep.subr.mxu0 0.0
    %1040 = vmatpush1.msra.mxu0 0.0
    %1041 = vmatprep.subr.mxu0 0.0
    %1042 = vmatpush1.msra.mxu0 0.0
    %1043 = vmatprep.subr.mxu0 0.0
    %1044 = vmatpush1.msra.mxu0 0.0
    %1045 = vmatprep.subr.mxu0 0.0
    %1046 = vmatpush1.msra.mxu0 0.0
    %1047 = vmatprep.subr.mxu0 0.0
    %1048 = vmatpush1.msra.mxu0 0.0
    %1049 = vmatprep.subr.mxu0 0.0
    %1050 = vmatpush1.msra.mxu0 0.0
    %1051 = vmatprep.subr.mxu0 0.0
    %1052 = vmatpush1.msra.mxu0 0.0
    %1053 = vmatprep.subr.mxu0 0.0
    %1054 = vmatpush1.msra.mxu0 0.0
    %1055 = vmatprep.subr.mxu0 0.0
    %1056 = vmatpush1.msra.mxu0 0.0
    %1057 = vmatprep.subr.mxu0 0.0
    %1058 = vmatpush1.msra.mxu0 0.0
    %1059 = vmatprep.subr.mxu0 0.0
    %1060 = vmatpush1.msra.mxu0 0.0
    %1061 = vmatprep.subr.mxu0 0.0
    %1062 = vmatpush1.msra.mxu0 0.0
    %1063 = vmatprep.subr.mxu0 0.0
    %1064 = vmatpush1.msra.mxu0 0.0
    %1065 = vmatprep.subr.mxu0 0.0
    %1066 = vmatpush1.msra.mxu0 0.0
    %1067 = vmatprep.subr.mxu0 0.0
    %1068 = vmatpush1.msra.mxu0 0.0
    %1069 = vmatprep.subr.mxu0 0.0
    %1070 = vmatpush1.msra.mxu0 0.0
    %1071 = vmatprep.subr.mxu0 0.0
    %1072 = vmatpush1.msra.mxu0 0.0
    %1073 = vmatprep.subr.mxu0 0.0
    %1074 = vmatpush1.msra.mxu0 0.0
    %1075 = vmatprep.subr.mxu0 0.0
    %1076 = vmatpush1.msra.mxu0 0.0
    %1077 = vmatprep.subr.mxu0 0.0
    %1078 = vmatpush1.msra.mxu0 0.0
    %1079 = vmatprep.subr.mxu0 0.0
    %1080 = vmatpush1.msra.mxu0 0.0
    %1081 = vmatprep.subr.mxu0 0.0
    %1082 = vmatpush1.msra.mxu0 0.0
    %1083 = vmatprep.subr.mxu0 0.0
    %1084 = vmatpush1.msra.mxu0 0.0
    %1085 = vmatprep.subr.mxu0 0.0
    %1086 = vmatpush1.msra.mxu0 0.0
    %1087 = vmatprep.subr.mxu0 0.0
    %1088 = vmatpush1.msra.mxu0 0.0
    %1089 = vmatprep.mubr.f32.mxu0 0.0
    %1090 = vmatmul.mubr.f32.gmra.mrb[0].mxu0 %v301
    %v1091 = vpop.f32.mrb[0].mxu0
    %v1092 = vadd.f32 %v1018, %v1091
    %v1093 = vpop.f32.mrb[0].mxu0
    %1094 = vmatprep.mubr.f32.mxu0 0.0
    %1095 = vmatmul.mubr.f32.gmra.mrb[0].mxu0 %v402
    %v1096 = vpop.f32.mrb[0].mxu0
    %v1097 = vadd.f32 %v1018, %v1096
    %v1098 = vpop.f32.mrb[0].mxu0
    %1099 = vmatprep.mubr.f32.mxu0 0.0
    %1100 = vmatmul.mubr.f32.gmra.mrb[0].mxu0 %v503
    %v1101 = vpop.f32.mrb[0].mxu0
    %v1102 = vadd.f32 %v1018, %v1101
    %v1103 = vpop.f32.mrb[0].mxu0
    %1104 = vmatprep.mubr.f32.mxu0 0.0
    %1105 = vmatmul.mubr.f32.gmra.mrb[0].mxu0 %v604
    %v1106 = vpop.f32.mrb[0].mxu0
    %v1107 = vadd.f32 %v1018, %v1106
    %v1108 = vpop.f32.mrb[0].mxu0
    %1109 = vmatprep.mubr.f32.mxu0 0.0
    %1110 = vmatmul.mubr.f32.gmra.mrb[0].mxu0 %v705
    %v1111 = vpop.f32.mrb[0].mxu0
    %v1112 = vadd.f32 %v1018, %v1111
    %v1113 = vpop.f32.mrb[0].mxu0
    %1114 = vmatprep.mubr.f32.mxu0 0.0
    %1115 = vmatmul.mubr.f32.gmra.mrb[0].mxu0 %v806
    %v1116 = vpop.f32.mrb[0].mxu0
    %v1117 = vadd.f32 %v1018, %v1116
    %v1118 = vpop.f32.mrb[0].mxu0
    %1119 = vmatprep.mubr.f32.mxu0 0.0
    %1120 = vmatmul.mubr.f32.gmra.mrb[0].mxu0 %v907
    %v1121 = vpop.f32.mrb[0].mxu0
    %v1122 = vadd.f32 %v1018, %v1121
    %v1123 = vpop.f32.mrb[0].mxu0
    %1124 = vmatprep.mubr.f32.mxu0 0.0
    %1125 = vmatmul.mubr.f32.gmra.mrb[0].mxu0 %v1023
    %v1126 = vpop.f32.mrb[0].mxu0
    %v1127 = vadd.f32 %v1018, %v1126
    %v1128 = vpop.f32.mrb[0].mxu0
    %1129 = vdwg.mxu0
    %1130 = vmatprep.subr.mxu0 0.0
    %1131 = vmatpush1.msra.mxu0 %v1009
    %1132 = vmatprep.subr.mxu0 0.0
    %1133 = vmatpush1.msra.mxu0 %v1010
    %1134 = vmatprep.subr.mxu0 0.0
    %1135 = vmatpush1.msra.mxu0 %v1011
    %1136 = vmatprep.subr.mxu0 0.0
    %1137 = vmatpush1.msra.mxu0 %v1012
    %1138 = vmatprep.subr.mxu0 0.0
    %1139 = vmatpush1.msra.mxu0 0.0
    %1140 = vmatprep.subr.mxu0 0.0
    %1141 = vmatpush1.msra.mxu0 0.0
    %1142 = vmatprep.subr.mxu0 0.0
    %1143 = vmatpush1.msra.mxu0 0.0
    %1144 = vmatprep.subr.mxu0 0.0
    %1145 = vmatpush1.msra.mxu0 0.0
    %1146 = vmatprep.subr.mxu0 0.0
    %1147 = vmatpush1.msra.mxu0 0.0
    %1148 = vmatprep.subr.mxu0 0.0
    %1149 = vmatpush1.msra.mxu0 0.0
    %1150 = vmatprep.subr.mxu0 0.0
    %1151 = vmatpush1.msra.mxu0 0.0
    %1152 = vmatprep.subr.mxu0 0.0
    %1153 = vmatpush1.msra.mxu0 0.0
    %1154 = vmatprep.subr.mxu0 0.0
    %1155 = vmatpush1.msra.mxu0 0.0
    %1156 = vmatprep.subr.mxu0 0.0
    %1157 = vmatpush1.msra.mxu0 0.0
    %1158 = vmatprep.subr.mxu0 0.0
    %1159 = vmatpush1.msra.mxu0 0.0
    %1160 = vmatprep.subr.mxu0 0.0
    %1161 = vmatpush1.msra.mxu0 0.0
    %1162 = vmatprep.subr.mxu0 0.0
    %1163 = vmatpush1.msra.mxu0 0.0
    %1164 = vmatprep.subr.mxu0 0.0
    %1165 = vmatpush1.msra.mxu0 0.0
    %1166 = vmatprep.subr.mxu0 0.0
    %1167 = vmatpush1.msra.mxu0 0.0
    %1168 = vmatprep.subr.mxu0 0.0
    %1169 = vmatpush1.msra.mxu0 0.0
    %1170 = vmatprep.subr.mxu0 0.0
    %1171 = vmatpush1.msra.mxu0 0.0
    %1172 = vmatprep.subr.mxu0 0.0
    %1173 = vmatpush1.msra.mxu0 0.0
    %1174 = vmatprep.subr.mxu0 0.0
    %1175 = vmatpush1.msra.mxu0 0.0
    %1176 = vmatprep.subr.mxu0 0.0
    %1177 = vmatpush1.msra.mxu0 0.0
    %1178 = vmatprep.subr.mxu0 0.0
    %1179 = vmatpush1.msra.mxu0 0.0
    %1180 = vmatprep.subr.mxu0 0.0
    %1181 = vmatpush1.msra.mxu0 0.0
    %1182 = vmatprep.subr.mxu0 0.0
    %1183 = vmatpush1.msra.mxu0 0.0
    %1184 = vmatprep.subr.mxu0 0.0
    %1185 = vmatpush1.msra.mxu0 0.0
    %1186 = vmatprep.subr.mxu0 0.0
    %1187 = vmatpush1.msra.mxu0 0.0
    %1188 = vmatprep.subr.mxu0 0.0
    %1189 = vmatpush1.msra.mxu0 0.0
    %1190 = vmatprep.subr.mxu0 0.0
    %1191 = vmatpush1.msra.mxu0 0.0
    %1192 = vmatprep.subr.mxu0 0.0
    %1193 = vmatpush1.msra.mxu0 0.0
    %1194 = vmatprep.mubr.f32.mxu0 0.0
    %1195 = vmatmul.mubr.f32.gmra.mrb[0].mxu0 %v200
    %v1196 = vpop.f32.mrb[0].mxu0
    %v1197 = vadd.f32 0.0, %v1196
    %v1198 = vpop.f32.mrb[0].mxu0
    %1199 = vdwg.mxu0
    %v1200 = vadd.f32 %v1092, %v1197
    %v1201 = vxor.u32 %v1200, 2147483648
    %v1202 = vmul.f32 %v1201, 1.442695
    %v1203 = vpow.pop %v1202
    %v1204 = vadd.f32 %v1203, 1.0
    %v1205 = vrcp.pop %v1204
    %v1206 = vmul.f32 1.0, %v1205
    %v1207 = vmul.f32 %v1206, 2.0
    %v1208 = vsub.f32 %v1207, 1.0
    %v1209 = vmul.f32 %v1206, 0.0
    %1211 = vrot.lane.b32.xlu0 %v1208, 32
    %v1212 = vpop.permute.xlu0 %1211
    %v1214 = vmul.f32 %v1206, %v1212
    %1216 = vrot.lane.b32.xlu0 %v1214, 32
    %v1217 = vpop.permute.xlu0 %1216
    %v1219 = vadd.f32 %v1209, %v1217
    %v1220 = vtanh.pop %v1219
    %1222 = vrot.lane.b32.xlu0 %v1220, 32
    %v1223 = vpop.permute.xlu0 %1222
    %v1225 = vmul.f32 %v1206, %v1223
    %1227 = vrot.lane.b32.xlu0 %v1225, 64
    %v1228 = vpop.permute.xlu0 %1227
    %v1229 = vsel %vm198, %v1228, 0
    %1231 = vmatprep.subr.mxu0 0.0
    %1232 = vmatpush1.msra.mxu0 %v1009
    %1233 = vmatprep.subr.mxu0 0.0
    %1234 = vmatpush1.msra.mxu0 %v1010
    %1235 = vmatprep.subr.mxu0 0.0
    %1236 = vmatpush1.msra.mxu0 %v1011
    %1237 = vmatprep.subr.mxu0 0.0
    %1238 = vmatpush1.msra.mxu0 %v1012
    %1239 = vmatprep.subr.mxu0 0.0
    %1240 = vmatpush1.msra.mxu0 0.0
    %1241 = vmatprep.subr.mxu0 0.0
    %1242 = vmatpush1.msra.mxu0 0.0
    %1243 = vmatprep.subr.mxu0 0.0
    %1244 = vmatpush1.msra.mxu0 0.0
    %1245 = vmatprep.subr.mxu0 0.0
    %1246 = vmatpush1.msra.mxu0 0.0
    %1247 = vmatprep.subr.mxu0 0.0
    %1248 = vmatpush1.msra.mxu0 0.0
    %1249 = vmatprep.subr.mxu0 0.0
    %1250 = vmatpush1.msra.mxu0 0.0
    %1251 = vmatprep.subr.mxu0 0.0
    %1252 = vmatpush1.msra.mxu0 0.0
    %1253 = vmatprep.subr.mxu0 0.0
    %1254 = vmatpush1.msra.mxu0 0.0
    %1255 = vmatprep.subr.mxu0 0.0
    %1256 = vmatpush1.msra.mxu0 0.0
    %1257 = vmatprep.subr.mxu0 0.0
    %1258 = vmatpush1.msra.mxu0 0.0
    %1259 = vmatprep.subr.mxu0 0.0
    %1260 = vmatpush1.msra.mxu0 0.0
    %1261 = vmatprep.subr.mxu0 0.0
    %1262 = vmatpush1.msra.mxu0 0.0
    %1263 = vmatprep.subr.mxu0 0.0
    %1264 = vmatpush1.msra.mxu0 0.0
    %1265 = vmatprep.subr.mxu0 0.0
    %1266 = vmatpush1.msra.mxu0 0.0
    %1267 = vmatprep.subr.mxu0 0.0
    %1268 = vmatpush1.msra.mxu0 0.0
    %1269 = vmatprep.subr.mxu0 0.0
    %1270 = vmatpush1.msra.mxu0 0.0
    %1271 = vmatprep.subr.mxu0 0.0
    %1272 = vmatpush1.msra.mxu0 0.0
    %1273 = vmatprep.subr.mxu0 0.0
    %1274 = vmatpush1.msra.mxu0 0.0
    %1275 = vmatprep.subr.mxu0 0.0
    %1276 = vmatpush1.msra.mxu0 0.0
    %1277 = vmatprep.subr.mxu0 0.0
    %1278 = vmatpush1.msra.mxu0 0.0
    %1279 = vmatprep.subr.mxu0 0.0
    %1280 = vmatpush1.msra.mxu0 0.0
    %1281 = vmatprep.subr.mxu0 0.0
    %1282 = vmatpush1.msra.mxu0 0.0
    %1283 = vmatprep.subr.mxu0 0.0
    %1284 = vmatpush1.msra.mxu0 0.0
    %1285 = vmatprep.subr.mxu0 0.0
    %1286 = vmatpush1.msra.mxu0 0.0
    %1287 = vmatprep.subr.mxu0 0.0
    %1288 = vmatpush1.msra.mxu0 0.0
    %1289 = vmatprep.subr.mxu0 0.0
    %1290 = vmatpush1.msra.mxu0 0.0
    %1291 = vmatprep.subr.mxu0 0.0
    %1292 = vmatpush1.msra.mxu0 0.0
    %1293 = vmatprep.subr.mxu0 0.0
    %1294 = vmatpush1.msra.mxu0 0.0
    %1295 = vmatprep.mubr.f32.mxu0 0.0
    %1296 = vmatmul.mubr.f32.gmra.mrb[0].mxu0 %v1229
    %v1297 = vpop.f32.mrb[0].mxu0
    %v1298 = vadd.f32 0.0, %v1297
    %v1299 = vpop.f32.mrb[0].mxu0
    %1300 = vdwg.mxu0
    %v1301 = vadd.f32 %v1097, %v1298
    %v1302 = vxor.u32 %v1301, 2147483648
    %v1303 = vmul.f32 %v1302, 1.442695
    %v1304 = vpow.pop %v1303
    %v1305 = vadd.f32 %v1304, 1.0
    %v1306 = vrcp.pop %v1305
    %v1307 = vmul.f32 1.0, %v1306
    %v1308 = vmul.f32 %v1307, 2.0
    %v1309 = vsub.f32 %v1308, 1.0
    %v1310 = vmul.f32 %v1307, %v1219
    %1312 = vrot.lane.b32.xlu0 %v1309, 32
    %v1313 = vpop.permute.xlu0 %1312
    %v1315 = vmul.f32 %v1307, %v1313
    %1317 = vrot.lane.b32.xlu0 %v1315, 32
    %v1318 = vpop.permute.xlu0 %1317
    %v1320 = vadd.f32 %v1310, %v1318
    %v1321 = vtanh.pop %v1320
    %1323 = vrot.lane.b32.xlu0 %v1321, 32
    %v1324 = vpop.permute.xlu0 %1323
    %v1326 = vmul.f32 %v1307, %v1324
    %1328 = vrot.lane.b32.xlu0 %v1326, 64
    %v1329 = vpop.permute.xlu0 %1328
    %v1330 = vsel %vm198, %v1329, 0
    %1332 = vmatprep.subr.mxu0 0.0
    %1333 = vmatpush1.msra.mxu0 %v1009
    %1334 = vmatprep.subr.mxu0 0.0
    %1335 = vmatpush1.msra.mxu0 %v1010
    %1336 = vmatprep.subr.mxu0 0.0
    %1337 = vmatpush1.msra.mxu0 %v1011
    %1338 = vmatprep.subr.mxu0 0.0
    %1339 = vmatpush1.msra.mxu0 %v1012
    %1340 = vmatprep.subr.mxu0 0.0
    %1341 = vmatpush1.msra.mxu0 0.0
    %1342 = vmatprep.subr.mxu0 0.0
    %1343 = vmatpush1.msra.mxu0 0.0
    %1344 = vmatprep.subr.mxu0 0.0
    %1345 = vmatpush1.msra.mxu0 0.0
    %1346 = vmatprep.subr.mxu0 0.0
    %1347 = vmatpush1.msra.mxu0 0.0
    %1348 = vmatprep.subr.mxu0 0.0
    %1349 = vmatpush1.msra.mxu0 0.0
    %1350 = vmatprep.subr.mxu0 0.0
    %1351 = vmatpush1.msra.mxu0 0.0
    %1352 = vmatprep.subr.mxu0 0.0
    %1353 = vmatpush1.msra.mxu0 0.0
    %1354 = vmatprep.subr.mxu0 0.0
    %1355 = vmatpush1.msra.mxu0 0.0
    %1356 = vmatprep.subr.mxu0 0.0
    %1357 = vmatpush1.msra.mxu0 0.0
    %1358 = vmatprep.subr.mxu0 0.0
    %1359 = vmatpush1.msra.mxu0 0.0
    %1360 = vmatprep.subr.mxu0 0.0
    %1361 = vmatpush1.msra.mxu0 0.0
    %1362 = vmatprep.subr.mxu0 0.0
    %1363 = vmatpush1.msra.mxu0 0.0
    %1364 = vmatprep.subr.mxu0 0.0
    %1365 = vmatpush1.msra.mxu0 0.0
    %1366 = vmatprep.subr.mxu0 0.0
    %1367 = vmatpush1.msra.mxu0 0.0
    %1368 = vmatprep.subr.mxu0 0.0
    %1369 = vmatpush1.msra.mxu0 0.0
    %1370 = vmatprep.subr.mxu0 0.0
    %1371 = vmatpush1.msra.mxu0 0.0
    %1372 = vmatprep.subr.mxu0 0.0
    %1373 = vmatpush1.msra.mxu0 0.0
    %1374 = vmatprep.subr.mxu0 0.0
    %1375 = vmatpush1.msra.mxu0 0.0
    %1376 = vmatprep.subr.mxu0 0.0
    %1377 = vmatpush1.msra.mxu0 0.0
    %1378 = vmatprep.subr.mxu0 0.0
    %1379 = vmatpush1.msra.mxu0 0.0
    %1380 = vmatprep.subr.mxu0 0.0
    %1381 = vmatpush1.msra.mxu0 0.0
    %1382 = vmatprep.subr.mxu0 0.0
    %1383 = vmatpush1.msra.mxu0 0.0
    %1384 = vmatprep.subr.mxu0 0.0
    %1385 = vmatpush1.msra.mxu0 0.0
    %1386 = vmatprep.subr.mxu0 0.0
    %1387 = vmatpush1.msra.mxu0 0.0
    %1388 = vmatprep.subr.mxu0 0.0
    %1389 = vmatpush1.msra.mxu0 0.0
    %1390 = vmatprep.subr.mxu0 0.0
    %1391 = vmatpush1.msra.mxu0 0.0
    %1392 = vmatprep.subr.mxu0 0.0
    %1393 = vmatpush1.msra.mxu0 0.0
    %1394 = vmatprep.subr.mxu0 0.0
    %1395 = vmatpush1.msra.mxu0 0.0
    %1396 = vmatprep.mubr.f32.mxu0 0.0
    %1397 = vmatmul.mubr.f32.gmra.mrb[0].mxu0 %v1330
    %v1398 = vpop.f32.mrb[0].mxu0
    %v1399 = vadd.f32 0.0, %v1398
    %v1400 = vpop.f32.mrb[0].mxu0
    %1401 = vdwg.mxu0
    %v1402 = vadd.f32 %v1102, %v1399
    %v1403 = vxor.u32 %v1402, 2147483648
    %v1404 = vmul.f32 %v1403, 1.442695
    %v1405 = vpow.pop %v1404
    %v1406 = vadd.f32 %v1405, 1.0
    %v1407 = vrcp.pop %v1406
    %v1408 = vmul.f32 1.0, %v1407
    %v1409 = vmul.f32 %v1408, 2.0
    %v1410 = vsub.f32 %v1409, 1.0
    %v1411 = vmul.f32 %v1408, %v1320
    %1413 = vrot.lane.b32.xlu0 %v1410, 32
    %v1414 = vpop.permute.xlu0 %1413
    %v1416 = vmul.f32 %v1408, %v1414
    %1418 = vrot.lane.b32.xlu0 %v1416, 32
    %v1419 = vpop.permute.xlu0 %1418
    %v1421 = vadd.f32 %v1411, %v1419
    %v1422 = vtanh.pop %v1421
    %1424 = vrot.lane.b32.xlu0 %v1422, 32
    %v1425 = vpop.permute.xlu0 %1424
    %v1427 = vmul.f32 %v1408, %v1425
    %1429 = vrot.lane.b32.xlu0 %v1427, 64
    %v1430 = vpop.permute.xlu0 %1429
    %v1431 = vsel %vm198, %v1430, 0
    %1433 = vmatprep.subr.mxu0 0.0
    %1434 = vmatpush1.msra.mxu0 %v1009
    %1435 = vmatprep.subr.mxu0 0.0
    %1436 = vmatpush1.msra.mxu0 %v1010
    %1437 = vmatprep.subr.mxu0 0.0
    %1438 = vmatpush1.msra.mxu0 %v1011
    %1439 = vmatprep.subr.mxu0 0.0
    %1440 = vmatpush1.msra.mxu0 %v1012
    %1441 = vmatprep.subr.mxu0 0.0
    %1442 = vmatpush1.msra.mxu0 0.0
    %1443 = vmatprep.subr.mxu0 0.0
    %1444 = vmatpush1.msra.mxu0 0.0
    %1445 = vmatprep.subr.mxu0 0.0
    %1446 = vmatpush1.msra.mxu0 0.0
    %1447 = vmatprep.subr.mxu0 0.0
    %1448 = vmatpush1.msra.mxu0 0.0
    %1449 = vmatprep.subr.mxu0 0.0
    %1450 = vmatpush1.msra.mxu0 0.0
    %1451 = vmatprep.subr.mxu0 0.0
    %1452 = vmatpush1.msra.mxu0 0.0
    %1453 = vmatprep.subr.mxu0 0.0
    %1454 = vmatpush1.msra.mxu0 0.0
    %1455 = vmatprep.subr.mxu0 0.0
    %1456 = vmatpush1.msra.mxu0 0.0
    %1457 = vmatprep.subr.mxu0 0.0
    %1458 = vmatpush1.msra.mxu0 0.0
    %1459 = vmatprep.subr.mxu0 0.0
    %1460 = vmatpush1.msra.mxu0 0.0
    %1461 = vmatprep.subr.mxu0 0.0
    %1462 = vmatpush1.msra.mxu0 0.0
    %1463 = vmatprep.subr.mxu0 0.0
    %1464 = vmatpush1.msra.mxu0 0.0
    %1465 = vmatprep.subr.mxu0 0.0
    %1466 = vmatpush1.msra.mxu0 0.0
    %1467 = vmatprep.subr.mxu0 0.0
    %1468 = vmatpush1.msra.mxu0 0.0
    %1469 = vmatprep.subr.mxu0 0.0
    %1470 = vmatpush1.msra.mxu0 0.0
    %1471 = vmatprep.subr.mxu0 0.0
    %1472 = vmatpush1.msra.mxu0 0.0
    %1473 = vmatprep.subr.mxu0 0.0
    %1474 = vmatpush1.msra.mxu0 0.0
    %1475 = vmatprep.subr.mxu0 0.0
    %1476 = vmatpush1.msra.mxu0 0.0
    %1477 = vmatprep.subr.mxu0 0.0
    %1478 = vmatpush1.msra.mxu0 0.0
    %1479 = vmatprep.subr.mxu0 0.0
    %1480 = vmatpush1.msra.mxu0 0.0
    %1481 = vmatprep.subr.mxu0 0.0
    %1482 = vmatpush1.msra.mxu0 0.0
    %1483 = vmatprep.subr.mxu0 0.0
    %1484 = vmatpush1.msra.mxu0 0.0
    %1485 = vmatprep.subr.mxu0 0.0
    %1486 = vmatpush1.msra.mxu0 0.0
    %1487 = vmatprep.subr.mxu0 0.0
    %1488 = vmatpush1.msra.mxu0 0.0
    %1489 = vmatprep.subr.mxu0 0.0
    %1490 = vmatpush1.msra.mxu0 0.0
    %1491 = vmatprep.subr.mxu0 0.0
    %1492 = vmatpush1.msra.mxu0 0.0
    %1493 = vmatprep.subr.mxu0 0.0
    %1494 = vmatpush1.msra.mxu0 0.0
    %1495 = vmatprep.subr.mxu0 0.0
    %1496 = vmatpush1.msra.mxu0 0.0
    %1497 = vmatprep.mubr.f32.mxu0 0.0
    %1498 = vmatmul.mubr.f32.gmra.mrb[0].mxu0 %v1431
    %v1499 = vpop.f32.mrb[0].mxu0
    %v1500 = vadd.f32 0.0, %v1499
    %v1501 = vpop.f32.mrb[0].mxu0
    %1502 = vdwg.mxu0
    %v1503 = vadd.f32 %v1107, %v1500
    %v1504 = vxor.u32 %v1503, 2147483648
    %v1505 = vmul.f32 %v1504, 1.442695
    %v1506 = vpow.pop %v1505
    %v1507 = vadd.f32 %v1506, 1.0
    %v1508 = vrcp.pop %v1507
    %v1509 = vmul.f32 1.0, %v1508
    %v1510 = vmul.f32 %v1509, 2.0
    %v1511 = vsub.f32 %v1510, 1.0
    %v1512 = vmul.f32 %v1509, %v1421
    %1514 = vrot.lane.b32.xlu0 %v1511, 32
    %v1515 = vpop.permute.xlu0 %1514
    %v1517 = vmul.f32 %v1509, %v1515
    %1519 = vrot.lane.b32.xlu0 %v1517, 32
    %v1520 = vpop.permute.xlu0 %1519
    %v1522 = vadd.f32 %v1512, %v1520
    %v1523 = vtanh.pop %v1522
    %1525 = vrot.lane.b32.xlu0 %v1523, 32
    %v1526 = vpop.permute.xlu0 %1525
    %v1528 = vmul.f32 %v1509, %v1526
    %1530 = vrot.lane.b32.xlu0 %v1528, 64
    %v1531 = vpop.permute.xlu0 %1530
    %v1532 = vsel %vm198, %v1531, 0
    %1534 = vmatprep.subr.mxu0 0.0
    %1535 = vmatpush1.msra.mxu0 %v1009
    %1536 = vmatprep.subr.mxu0 0.0
    %1537 = vmatpush1.msra.mxu0 %v1010
    %1538 = vmatprep.subr.mxu0 0.0
    %1539 = vmatpush1.msra.mxu0 %v1011
    %1540 = vmatprep.subr.mxu0 0.0
    %1541 = vmatpush1.msra.mxu0 %v1012
    %1542 = vmatprep.subr.mxu0 0.0
    %1543 = vmatpush1.msra.mxu0 0.0
    %1544 = vmatprep.subr.mxu0 0.0
    %1545 = vmatpush1.msra.mxu0 0.0
    %1546 = vmatprep.subr.mxu0 0.0
    %1547 = vmatpush1.msra.mxu0 0.0
    %1548 = vmatprep.subr.mxu0 0.0
    %1549 = vmatpush1.msra.mxu0 0.0
    %1550 = vmatprep.subr.mxu0 0.0
    %1551 = vmatpush1.msra.mxu0 0.0
    %1552 = vmatprep.subr.mxu0 0.0
    %1553 = vmatpush1.msra.mxu0 0.0
    %1554 = vmatprep.subr.mxu0 0.0
    %1555 = vmatpush1.msra.mxu0 0.0
    %1556 = vmatprep.subr.mxu0 0.0
    %1557 = vmatpush1.msra.mxu0 0.0
    %1558 = vmatprep.subr.mxu0 0.0
    %1559 = vmatpush1.msra.mxu0 0.0
    %1560 = vmatprep.subr.mxu0 0.0
    %1561 = vmatpush1.msra.mxu0 0.0
    %1562 = vmatprep.subr.mxu0 0.0
    %1563 = vmatpush1.msra.mxu0 0.0
    %1564 = vmatprep.subr.mxu0 0.0
    %1565 = vmatpush1.msra.mxu0 0.0
    %1566 = vmatprep.subr.mxu0 0.0
    %1567 = vmatpush1.msra.mxu0 0.0
    %1568 = vmatprep.subr.mxu0 0.0
    %1569 = vmatpush1.msra.mxu0 0.0
    %1570 = vmatprep.subr.mxu0 0.0
    %1571 = vmatpush1.msra.mxu0 0.0
    %1572 = vmatprep.subr.mxu0 0.0
    %1573 = vmatpush1.msra.mxu0 0.0
    %1574 = vmatprep.subr.mxu0 0.0
    %1575 = vmatpush1.msra.mxu0 0.0
    %1576 = vmatprep.subr.mxu0 0.0
    %1577 = vmatpush1.msra.mxu0 0.0
    %1578 = vmatprep.subr.mxu0 0.0
    %1579 = vmatpush1.msra.mxu0 0.0
    %1580 = vmatprep.subr.mxu0 0.0
    %1581 = vmatpush1.msra.mxu0 0.0
    %1582 = vmatprep.subr.mxu0 0.0
    %1583 = vmatpush1.msra.mxu0 0.0
    %1584 = vmatprep.subr.mxu0 0.0
    %1585 = vmatpush1.msra.mxu0 0.0
    %1586 = vmatprep.subr.mxu0 0.0
    %1587 = vmatpush1.msra.mxu0 0.0
    %1588 = vmatprep.subr.mxu0 0.0
    %1589 = vmatpush1.msra.mxu0 0.0
    %1590 = vmatprep.subr.mxu0 0.0
    %1591 = vmatpush1.msra.mxu0 0.0
    %1592 = vmatprep.subr.mxu0 0.0
    %1593 = vmatpush1.msra.mxu0 0.0
    %1594 = vmatprep.subr.mxu0 0.0
    %1595 = vmatpush1.msra.mxu0 0.0
    %1596 = vmatprep.subr.mxu0 0.0
    %1597 = vmatpush1.msra.mxu0 0.0
    %1598 = vmatprep.mubr.f32.mxu0 0.0
    %1599 = vmatmul.mubr.f32.gmra.mrb[0].mxu0 %v1532
    %v1600 = vpop.f32.mrb[0].mxu0
    %v1601 = vadd.f32 0.0, %v1600
    %v1602 = vpop.f32.mrb[0].mxu0
    %1603 = vdwg.mxu0
    %v1604 = vadd.f32 %v1112, %v1601
    %v1605 = vxor.u32 %v1604, 2147483648
    %v1606 = vmul.f32 %v1605, 1.442695
    %v1607 = vpow.pop %v1606
    %v1608 = vadd.f32 %v1607, 1.0
    %v1609 = vrcp.pop %v1608
    %v1610 = vmul.f32 1.0, %v1609
    %v1611 = vmul.f32 %v1610, 2.0
    %v1612 = vsub.f32 %v1611, 1.0
    %v1613 = vmul.f32 %v1610, %v1522
    %1615 = vrot.lane.b32.xlu0 %v1612, 32
    %v1616 = vpop.permute.xlu0 %1615
    %v1618 = vmul.f32 %v1610, %v1616
    %1620 = vrot.lane.b32.xlu0 %v1618, 32
    %v1621 = vpop.permute.xlu0 %1620
    %v1623 = vadd.f32 %v1613, %v1621
    %v1624 = vtanh.pop %v1623
    %1626 = vrot.lane.b32.xlu0 %v1624, 32
    %v1627 = vpop.permute.xlu0 %1626
    %v1629 = vmul.f32 %v1610, %v1627
    %1631 = vrot.lane.b32.xlu0 %v1629, 64
    %v1632 = vpop.permute.xlu0 %1631
    %v1633 = vsel %vm198, %v1632, 0
    %1635 = vmatprep.subr.mxu0 0.0
    %1636 = vmatpush1.msra.mxu0 %v1009
    %1637 = vmatprep.subr.mxu0 0.0
    %1638 = vmatpush1.msra.mxu0 %v1010
    %1639 = vmatprep.subr.mxu0 0.0
    %1640 = vmatpush1.msra.mxu0 %v1011
    %1641 = vmatprep.subr.mxu0 0.0
    %1642 = vmatpush1.msra.mxu0 %v1012
    %1643 = vmatprep.subr.mxu0 0.0
    %1644 = vmatpush1.msra.mxu0 0.0
    %1645 = vmatprep.subr.mxu0 0.0
    %1646 = vmatpush1.msra.mxu0 0.0
    %1647 = vmatprep.subr.mxu0 0.0
    %1648 = vmatpush1.msra.mxu0 0.0
    %1649 = vmatprep.subr.mxu0 0.0
    %1650 = vmatpush1.msra.mxu0 0.0
    %1651 = vmatprep.subr.mxu0 0.0
    %1652 = vmatpush1.msra.mxu0 0.0
    %1653 = vmatprep.subr.mxu0 0.0
    %1654 = vmatpush1.msra.mxu0 0.0
    %1655 = vmatprep.subr.mxu0 0.0
    %1656 = vmatpush1.msra.mxu0 0.0
    %1657 = vmatprep.subr.mxu0 0.0
    %1658 = vmatpush1.msra.mxu0 0.0
    %1659 = vmatprep.subr.mxu0 0.0
    %1660 = vmatpush1.msra.mxu0 0.0
    %1661 = vmatprep.subr.mxu0 0.0
    %1662 = vmatpush1.msra.mxu0 0.0
    %1663 = vmatprep.subr.mxu0 0.0
    %1664 = vmatpush1.msra.mxu0 0.0
    %1665 = vmatprep.subr.mxu0 0.0
    %1666 = vmatpush1.msra.mxu0 0.0
    %1667 = vmatprep.subr.mxu0 0.0
    %1668 = vmatpush1.msra.mxu0 0.0
    %1669 = vmatprep.subr.mxu0 0.0
    %1670 = vmatpush1.msra.mxu0 0.0
    %1671 = vmatprep.subr.mxu0 0.0
    %1672 = vmatpush1.msra.mxu0 0.0
    %1673 = vmatprep.subr.mxu0 0.0
    %1674 = vmatpush1.msra.mxu0 0.0
    %1675 = vmatprep.subr.mxu0 0.0
    %1676 = vmatpush1.msra.mxu0 0.0
    %1677 = vmatprep.subr.mxu0 0.0
    %1678 = vmatpush1.msra.mxu0 0.0
    %1679 = vmatprep.subr.mxu0 0.0
    %1680 = vmatpush1.msra.mxu0 0.0
    %1681 = vmatprep.subr.mxu0 0.0
    %1682 = vmatpush1.msra.mxu0 0.0
    %1683 = vmatprep.subr.mxu0 0.0
    %1684 = vmatpush1.msra.mxu0 0.0
    %1685 = vmatprep.subr.mxu0 0.0
    %1686 = vmatpush1.msra.mxu0 0.0
    %1687 = vmatprep.subr.mxu0 0.0
    %1688 = vmatpush1.msra.mxu0 0.0
    %1689 = vmatprep.subr.mxu0 0.0
    %1690 = vmatpush1.msra.mxu0 0.0
    %1691 = vmatprep.subr.mxu0 0.0
    %1692 = vmatpush1.msra.mxu0 0.0
    %1693 = vmatprep.subr.mxu0 0.0
    %1694 = vmatpush1.msra.mxu0 0.0
    %1695 = vmatprep.subr.mxu0 0.0
    %1696 = vmatpush1.msra.mxu0 0.0
    %1697 = vmatprep.subr.mxu0 0.0
    %1698 = vmatpush1.msra.mxu0 0.0
    %1699 = vmatprep.mubr.f32.mxu0 0.0
    %1700 = vmatmul.mubr.f32.gmra.mrb[0].mxu0 %v1633
    %v1701 = vpop.f32.mrb[0].mxu0
    %v1702 = vadd.f32 0.0, %v1701
    %v1703 = vpop.f32.mrb[0].mxu0
    %1704 = vdwg.mxu0
    %v1705 = vadd.f32 %v1117, %v1702
    %v1706 = vxor.u32 %v1705, 2147483648
    %v1707 = vmul.f32 %v1706, 1.442695
    %v1708 = vpow.pop %v1707
    %v1709 = vadd.f32 %v1708, 1.0
    %v1710 = vrcp.pop %v1709
    %v1711 = vmul.f32 1.0, %v1710
    %v1712 = vmul.f32 %v1711, 2.0
    %v1713 = vsub.f32 %v1712, 1.0
    %v1714 = vmul.f32 %v1711, %v1623
    %1716 = vrot.lane.b32.xlu0 %v1713, 32
    %v1717 = vpop.permute.xlu0 %1716
    %v1719 = vmul.f32 %v1711, %v1717
    %1721 = vrot.lane.b32.xlu0 %v1719, 32
    %v1722 = vpop.permute.xlu0 %1721
    %v1724 = vadd.f32 %v1714, %v1722
    %v1725 = vtanh.pop %v1724
    %1727 = vrot.lane.b32.xlu0 %v1725, 32
    %v1728 = vpop.permute.xlu0 %1727
    %v1730 = vmul.f32 %v1711, %v1728
    %1732 = vrot.lane.b32.xlu0 %v1730, 64
    %v1733 = vpop.permute.xlu0 %1732
    %v1734 = vsel %vm198, %v1733, 0
    %1736 = vmatprep.subr.mxu0 0.0
    %1737 = vmatpush1.msra.mxu0 %v1009
    %1738 = vmatprep.subr.mxu0 0.0
    %1739 = vmatpush1.msra.mxu0 %v1010
    %1740 = vmatprep.subr.mxu0 0.0
    %1741 = vmatpush1.msra.mxu0 %v1011
    %1742 = vmatprep.subr.mxu0 0.0
    %1743 = vmatpush1.msra.mxu0 %v1012
    %1744 = vmatprep.subr.mxu0 0.0
    %1745 = vmatpush1.msra.mxu0 0.0
    %1746 = vmatprep.subr.mxu0 0.0
    %1747 = vmatpush1.msra.mxu0 0.0
    %1748 = vmatprep.subr.mxu0 0.0
    %1749 = vmatpush1.msra.mxu0 0.0
    %1750 = vmatprep.subr.mxu0 0.0
    %1751 = vmatpush1.msra.mxu0 0.0
    %1752 = vmatprep.subr.mxu0 0.0
    %1753 = vmatpush1.msra.mxu0 0.0
    %1754 = vmatprep.subr.mxu0 0.0
    %1755 = vmatpush1.msra.mxu0 0.0
    %1756 = vmatprep.subr.mxu0 0.0
    %1757 = vmatpush1.msra.mxu0 0.0
    %1758 = vmatprep.subr.mxu0 0.0
    %1759 = vmatpush1.msra.mxu0 0.0
    %1760 = vmatprep.subr.mxu0 0.0
    %1761 = vmatpush1.msra.mxu0 0.0
    %1762 = vmatprep.subr.mxu0 0.0
    %1763 = vmatpush1.msra.mxu0 0.0
    %1764 = vmatprep.subr.mxu0 0.0
    %1765 = vmatpush1.msra.mxu0 0.0
    %1766 = vmatprep.subr.mxu0 0.0
    %1767 = vmatpush1.msra.mxu0 0.0
    %1768 = vmatprep.subr.mxu0 0.0
    %1769 = vmatpush1.msra.mxu0 0.0
    %1770 = vmatprep.subr.mxu0 0.0
    %1771 = vmatpush1.msra.mxu0 0.0
    %1772 = vmatprep.subr.mxu0 0.0
    %1773 = vmatpush1.msra.mxu0 0.0
    %1774 = vmatprep.subr.mxu0 0.0
    %1775 = vmatpush1.msra.mxu0 0.0
    %1776 = vmatprep.subr.mxu0 0.0
    %1777 = vmatpush1.msra.mxu0 0.0
    %1778 = vmatprep.subr.mxu0 0.0
    %1779 = vmatpush1.msra.mxu0 0.0
    %1780 = vmatprep.subr.mxu0 0.0
    %1781 = vmatpush1.msra.mxu0 0.0
    %1782 = vmatprep.subr.mxu0 0.0
    %1783 = vmatpush1.msra.mxu0 0.0
    %1784 = vmatprep.subr.mxu0 0.0
    %1785 = vmatpush1.msra.mxu0 0.0
    %1786 = vmatprep.subr.mxu0 0.0
    %1787 = vmatpush1.msra.mxu0 0.0
    %1788 = vmatprep.subr.mxu0 0.0
    %1789 = vmatpush1.msra.mxu0 0.0
    %1790 = vmatprep.subr.mxu0 0.0
    %1791 = vmatpush1.msra.mxu0 0.0
    %1792 = vmatprep.subr.mxu0 0.0
    %1793 = vmatpush1.msra.mxu0 0.0
    %1794 = vmatprep.subr.mxu0 0.0
    %1795 = vmatpush1.msra.mxu0 0.0
    %1796 = vmatprep.subr.mxu0 0.0
    %1797 = vmatpush1.msra.mxu0 0.0
    %1798 = vmatprep.subr.mxu0 0.0
    %1799 = vmatpush1.msra.mxu0 0.0
    %1800 = vmatprep.mubr.f32.mxu0 0.0
    %1801 = vmatmul.mubr.f32.gmra.mrb[0].mxu0 %v1734
    %v1802 = vpop.f32.mrb[0].mxu0
    %v1803 = vadd.f32 0.0, %v1802
    %v1804 = vpop.f32.mrb[0].mxu0
    %1805 = vdwg.mxu0
    %v1806 = vadd.f32 %v1122, %v1803
    %v1807 = vxor.u32 %v1806, 2147483648
    %v1808 = vmul.f32 %v1807, 1.442695
    %v1809 = vpow.pop %v1808
    %v1810 = vadd.f32 %v1809, 1.0
    %v1811 = vrcp.pop %v1810
    %v1812 = vmul.f32 1.0, %v1811
    %v1813 = vmul.f32 %v1812, 2.0
    %v1814 = vsub.f32 %v1813, 1.0
    %v1815 = vmul.f32 %v1812, %v1724
    %1817 = vrot.lane.b32.xlu0 %v1814, 32
    %v1818 = vpop.permute.xlu0 %1817
    %v1820 = vmul.f32 %v1812, %v1818
    %1822 = vrot.lane.b32.xlu0 %v1820, 32
    %v1823 = vpop.permute.xlu0 %1822
    %v1825 = vadd.f32 %v1815, %v1823
    %v1826 = vtanh.pop %v1825
    %1828 = vrot.lane.b32.xlu0 %v1826, 32
    %v1829 = vpop.permute.xlu0 %1828
    %v1831 = vmul.f32 %v1812, %v1829
    %1833 = vrot.lane.b32.xlu0 %v1831, 64
    %v1834 = vpop.permute.xlu0 %1833
    %v1835 = vsel %vm198, %v1834, 0
    %1837 = vmatprep.subr.mxu0 0.0
    %1838 = vmatpush1.msra.mxu0 %v1009
    %1839 = vmatprep.subr.mxu0 0.0
    %1840 = vmatpush1.msra.mxu0 %v1010
    %1841 = vmatprep.subr.mxu0 0.0
    %1842 = vmatpush1.msra.mxu0 %v1011
    %1843 = vmatprep.subr.mxu0 0.0
    %1844 = vmatpush1.msra.mxu0 %v1012
    %1845 = vmatprep.subr.mxu0 0.0
    %1846 = vmatpush1.msra.mxu0 0.0
    %1847 = vmatprep.subr.mxu0 0.0
    %1848 = vmatpush1.msra.mxu0 0.0
    %1849 = vmatprep.subr.mxu0 0.0
    %1850 = vmatpush1.msra.mxu0 0.0
    %1851 = vmatprep.subr.mxu0 0.0
    %1852 = vmatpush1.msra.mxu0 0.0
    %1853 = vmatprep.subr.mxu0 0.0
    %1854 = vmatpush1.msra.mxu0 0.0
    %1855 = vmatprep.subr.mxu0 0.0
    %1856 = vmatpush1.msra.mxu0 0.0
    %1857 = vmatprep.subr.mxu0 0.0
    %1858 = vmatpush1.msra.mxu0 0.0
    %1859 = vmatprep.subr.mxu0 0.0
    %1860 = vmatpush1.msra.mxu0 0.0
    %1861 = vmatprep.subr.mxu0 0.0
    %1862 = vmatpush1.msra.mxu0 0.0
    %1863 = vmatprep.subr.mxu0 0.0
    %1864 = vmatpush1.msra.mxu0 0.0
    %1865 = vmatprep.subr.mxu0 0.0
    %1866 = vmatpush1.msra.mxu0 0.0
    %1867 = vmatprep.subr.mxu0 0.0
    %1868 = vmatpush1.msra.mxu0 0.0
    %1869 = vmatprep.subr.mxu0 0.0
    %1870 = vmatpush1.msra.mxu0 0.0
    %1871 = vmatprep.subr.mxu0 0.0
    %1872 = vmatpush1.msra.mxu0 0.0
    %1873 = vmatprep.subr.mxu0 0.0
    %1874 = vmatpush1.msra.mxu0 0.0
    %1875 = vmatprep.subr.mxu0 0.0
    %1876 = vmatpush1.msra.mxu0 0.0
    %1877 = vmatprep.subr.mxu0 0.0
    %1878 = vmatpush1.msra.mxu0 0.0
    %1879 = vmatprep.subr.mxu0 0.0
    %1880 = vmatpush1.msra.mxu0 0.0
    %1881 = vmatprep.subr.mxu0 0.0
    %1882 = vmatpush1.msra.mxu0 0.0
    %1883 = vmatprep.subr.mxu0 0.0
    %1884 = vmatpush1.msra.mxu0 0.0
    %1885 = vmatprep.subr.mxu0 0.0
    %1886 = vmatpush1.msra.mxu0 0.0
    %1887 = vmatprep.subr.mxu0 0.0
    %1888 = vmatpush1.msra.mxu0 0.0
    %1889 = vmatprep.subr.mxu0 0.0
    %1890 = vmatpush1.msra.mxu0 0.0
    %1891 = vmatprep.subr.mxu0 0.0
    %1892 = vmatpush1.msra.mxu0 0.0
    %1893 = vmatprep.subr.mxu0 0.0
    %1894 = vmatpush1.msra.mxu0 0.0
    %1895 = vmatprep.subr.mxu0 0.0
    %1896 = vmatpush1.msra.mxu0 0.0
    %1897 = vmatprep.subr.mxu0 0.0
    %1898 = vmatpush1.msra.mxu0 0.0
    %1899 = vmatprep.subr.mxu0 0.0
    %1900 = vmatpush1.msra.mxu0 0.0
    %1901 = vmatprep.mubr.f32.mxu0 0.0
    %1902 = vmatmul.mubr.f32.gmra.mrb[0].mxu0 %v1835
    %v1903 = vpop.f32.mrb[0].mxu0
    %v1904 = vadd.f32 0.0, %v1903
    %v1905 = vpop.f32.mrb[0].mxu0
    %1906 = vdwg.mxu0
    %v1907 = vadd.f32 %v1127, %v1904
    %v1908 = vxor.u32 %v1907, 2147483648
    %v1909 = vmul.f32 %v1908, 1.442695
    %v1910 = vpow.pop %v1909
    %v1911 = vadd.f32 %v1910, 1.0
    %v1912 = vrcp.pop %v1911
    %v1913 = vmul.f32 1.0, %v1912
    %v1914 = vmul.f32 %v1913, 2.0
    %v1915 = vsub.f32 %v1914, 1.0
    %v1916 = vmul.f32 %v1913, %v1825
    %1918 = vrot.lane.b32.xlu0 %v1915, 32
    %v1919 = vpop.permute.xlu0 %1918
    %v1921 = vmul.f32 %v1913, %v1919
    %1923 = vrot.lane.b32.xlu0 %v1921, 32
    %v1924 = vpop.permute.xlu0 %1923
    %v1926 = vadd.f32 %v1916, %v1924
    %v1927 = vtanh.pop %v1926
    %1929 = vrot.lane.b32.xlu0 %v1927, 32
    %v1930 = vpop.permute.xlu0 %1929
    %v1932 = vmul.f32 %v1913, %v1930
    %v1933 = vld [vmem:[%s7] sm:$0xff]
    %v1934 = vld [vmem:[%s7 + $0x8] sm:$0xff]
    %v1935 = vld [vmem:[%s7 + $0x10] sm:$0xff]
    %v1936 = vld [vmem:[%s7 + $0x18] sm:$0xff]
    %v1937 = vld [vmem:[%s8] sm:$0x1]
    %v1939 = vlaneseq
    %v1940 = vshrl.u32 %v1939, 7
    %v1941 = vsub.s32 0, %v1940
    %v1942 = vrot.slane %v1937, %v1941
    %1945 = vrot.lane.b32.xlu0 %v1932, 64
    %v1946 = vpop.permute.xlu0 %1945
    %v1947 = vsel %vm198, %v1946, 0
    %1949 = vmatprep.subr.mxu0 0.0
    %1950 = vmatpush1.msra.mxu0 %v1933
    %1951 = vmatprep.subr.mxu0 0.0
    %1952 = vmatpush1.msra.mxu0 %v1934
    %1953 = vmatprep.subr.mxu0 0.0
    %1954 = vmatpush1.msra.mxu0 %v1935
    %1955 = vmatprep.subr.mxu0 0.0
    %1956 = vmatpush1.msra.mxu0 %v1936
    %1957 = vmatprep.subr.mxu0 0.0
    %1958 = vmatpush1.msra.mxu0 0.0
    %1959 = vmatprep.subr.mxu0 0.0
    %1960 = vmatpush1.msra.mxu0 0.0
    %1961 = vmatprep.subr.mxu0 0.0
    %1962 = vmatpush1.msra.mxu0 0.0
    %1963 = vmatprep.subr.mxu0 0.0
    %1964 = vmatpush1.msra.mxu0 0.0
    %1965 = vmatprep.subr.mxu0 0.0
    %1966 = vmatpush1.msra.mxu0 0.0
    %1967 = vmatprep.subr.mxu0 0.0
    %1968 = vmatpush1.msra.mxu0 0.0
    %1969 = vmatprep.subr.mxu0 0.0
    %1970 = vmatpush1.msra.mxu0 0.0
    %1971 = vmatprep.subr.mxu0 0.0
    %1972 = vmatpush1.msra.mxu0 0.0
    %1973 = vmatprep.subr.mxu0 0.0
    %1974 = vmatpush1.msra.mxu0 0.0
    %1975 = vmatprep.subr.mxu0 0.0
    %1976 = vmatpush1.msra.mxu0 0.0
    %1977 = vmatprep.subr.mxu0 0.0
    %1978 = vmatpush1.msra.mxu0 0.0
    %1979 = vmatprep.subr.mxu0 0.0
    %1980 = vmatpush1.msra.mxu0 0.0
    %1981 = vmatprep.subr.mxu0 0.0
    %1982 = vmatpush1.msra.mxu0 0.0
    %1983 = vmatprep.subr.mxu0 0.0
    %1984 = vmatpush1.msra.mxu0 0.0
    %1985 = vmatprep.subr.mxu0 0.0
    %1986 = vmatpush1.msra.mxu0 0.0
    %1987 = vmatprep.subr.mxu0 0.0
    %1988 = vmatpush1.msra.mxu0 0.0
    %1989 = vmatprep.subr.mxu0 0.0
    %1990 = vmatpush1.msra.mxu0 0.0
    %1991 = vmatprep.subr.mxu0 0.0
    %1992 = vmatpush1.msra.mxu0 0.0
    %1993 = vmatprep.subr.mxu0 0.0
    %1994 = vmatpush1.msra.mxu0 0.0
    %1995 = vmatprep.subr.mxu0 0.0
    %1996 = vmatpush1.msra.mxu0 0.0
    %1997 = vmatprep.subr.mxu0 0.0
    %1998 = vmatpush1.msra.mxu0 0.0
    %1999 = vmatprep.subr.mxu0 0.0
    %2000 = vmatpush1.msra.mxu0 0.0
    %2001 = vmatprep.subr.mxu0 0.0
    %2002 = vmatpush1.msra.mxu0 0.0
    %2003 = vmatprep.subr.mxu0 0.0
    %2004 = vmatpush1.msra.mxu0 0.0
    %2005 = vmatprep.subr.mxu0 0.0
    %2006 = vmatpush1.msra.mxu0 0.0
    %2007 = vmatprep.subr.mxu0 0.0
    %2008 = vmatpush1.msra.mxu0 0.0
    %2009 = vmatprep.subr.mxu0 0.0
    %2010 = vmatpush1.msra.mxu0 0.0
    %2011 = vmatprep.subr.mxu0 0.0
    %2012 = vmatpush1.msra.mxu0 0.0
    %2013 = vmatprep.mubr.f32.mxu0 0.0
    %2014 = vmatmul.mubr.f32.gmra.mrb[0].mxu0 %v1947
    %v2015 = vpop.f32.mrb[0].mxu0
    %v2016 = vadd.f32 %v1942, %v2015
    %v2017 = vpop.f32.mrb[0].mxu0
    %2018 = vdwg.mxu0
    %v2019 = vxor.u32 %v2016, 2147483648
    %v2020 = vmul.f32 %v2019, 1.442695
    %v2021 = vpow.pop %v2020
    %v2022 = vadd.f32 %v2021, 1.0
    %v2023 = vrcp.pop %v2022
    %v2024 = vmul.f32 1.0, %v2023
    %2025 = vst [vmem:[%s9] sm:$0xff] %v2024
    // Predicated region
    $region42: #{cyclone_predictor_forward.1} parent=1 // pred_check
      _
    $region43: #{cyclone_predictor_forward.1} parent=1 // pred_check_branch
      %2027 = sbr.rel (0) target = $region45
    $region44: #{cyclone_predictor_forward.1} parent=1 // pred_region
      _
    $region45: #{cyclone_predictor_forward.1} parent=1 // pred_fallthru
      _
    // Predicated region
    $region46: #{cyclone_predictor_forward.1} parent=1 // pred_check
      _
    $region47: #{cyclone_predictor_forward.1} parent=1 // pred_check_branch
      %2029 = sbr.rel (0) target = $region49
    $region48: #{cyclone_predictor_forward.1} parent=1 // pred_region
      _
    $region49: #{cyclone_predictor_forward.1} parent=1 // pred_fallthru
      _
    %2030 = vsyncpa [#allocation3], 1

</llo_original>
